<compile_context>
chip_gen: v7x
topology: tpu7x:2x2x1
jax: 0.10.0
libtpu: 0.0.40
codegen_flags: <defaults>
</compile_context>

<pallas_src>
import jax
import jax.numpy as jnp
from jax.experimental import pallas as pl
from jax.experimental.pallas import tpu as pltpu


# --------------------------------------------------------------------------- #
# Kernel
# --------------------------------------------------------------------------- #
def decoder_kernel(z_ref, w1_ref, b1_ref, w2_ref, b2_ref, w3_ref, b3_ref, o_ref):
    # fc1 + ReLU: bf16 operands, f32 MXU accumulation; bias/ReLU stay in f32
    # (v5e's VPU/EUP have no bf16 path, so the f32 elementwise epilogue is the
    # right choice on all generations).
    h1 = jnp.dot(z_ref[...], w1_ref[...], preferred_element_type=jnp.float32)
    h1 = jnp.maximum(h1 + b1_ref[...], 0.0)
    # fc2 + ReLU (cast activation back to the matmul compute dtype).
    h2 = jnp.dot(h1.astype(w2_ref.dtype), w2_ref[...],
                 preferred_element_type=jnp.float32)
    h2 = jnp.maximum(h2 + b2_ref[...], 0.0)
    # fc3 + sigmoid
    h3 = jnp.dot(h2.astype(w3_ref.dtype), w3_ref[...],
                 preferred_element_type=jnp.float32)
    o_ref[...] = jax.nn.sigmoid(h3 + b3_ref[...]).astype(o_ref.dtype)


# --------------------------------------------------------------------------- #
# Parameter preparation (one-time, hoisted out of the per-call path)
# --------------------------------------------------------------------------- #
def prepare_decoder_params(w1, b1, w2, b2, w3, b3, *,
                           compute_dtype=jnp.bfloat16, lane_pad=128):
    """One-time prep: zero-pad hidden dims to multiples of `lane_pad` and cast
    matmul operands to `compute_dtype`. Padding is numerically exact (padded
    weight rows/cols and bias entries are zero, padded h1/h2 columns stay 0
    through ReLU and contribute nothing downstream). Biases stay f32."""
    def rup(n):
        return ((n + lane_pad - 1) // lane_pad) * lane_pad

    h1, h0 = w1.shape[1], w2.shape[1]
    h1p, h0p = rup(h1), rup(h0)
    if h1p != h1:                                  # pad fc1 out / fc2 in
        w1 = jnp.pad(w1, ((0, 0), (0, h1p - h1)))
        b1 = jnp.pad(b1, ((0, 0), (0, h1p - h1)))
        w2 = jnp.pad(w2, ((0, h1p - h1), (0, 0)))
    if h0p != h0:                                  # pad fc2 out / fc3 in
        w2 = jnp.pad(w2, ((0, 0), (0, h0p - h0)))
        b2 = jnp.pad(b2, ((0, 0), (0, h0p - h0)))
        w3 = jnp.pad(w3, ((0, h0p - h0), (0, 0)))

    return (w1.astype(compute_dtype), b1.astype(jnp.float32),
            w2.astype(compute_dtype), b2.astype(jnp.float32),
            w3.astype(compute_dtype), b3.astype(jnp.float32))


# --------------------------------------------------------------------------- #
# Tiling policy
# --------------------------------------------------------------------------- #
def _round_up(n, m):
    return ((n + m - 1) // m) * m


def _num_tensorcores():
    """Best-effort TensorCore-per-chip count (v7x has 2; v5e/v6e have 1)."""
    try:
        kind = jax.devices()[0].device_kind.lower()
    except Exception:
        return 1
    return 2 if "v7" in kind else 1


def _pick_batch_tile(B, num_cores, max_tile=1024):
    """Sublane-dense batch tile (multiple of 8), cap 1024 rows.
    Single-TC chips want the largest single tile (the grid is a serial loop,
    each extra step is ~0.35us pure overhead). A 2-TC chip wants an even >=2
    step grid so the "parallel" batch axis is sharded across both cores."""
    b8 = _round_up(max(B, 8), 8)
    if num_cores >= 2 and b8 >= 16:
        return min(max_tile, _round_up((b8 + 1) // 2, 8))
    return min(max_tile, b8)


# --------------------------------------------------------------------------- #
# Forward wrapper
# --------------------------------------------------------------------------- #
def decoder_forward(z, w1, b1, w2, b2, w3, b3, *, batch_tile=None,
                    compute_dtype=None, out_dtype=jnp.float32):
    """z: (B, latent_dim); weights are (in, out) [ideally pre-cast/padded via
    prepare_decoder_params]; biases are (1, out). Returns (B, out_dim)."""
    B, latent_dim = z.shape
    assert w1.shape[0] == latent_dim
    h1_dim = w1.shape[1]
    h0_dim = w2.shape[1]
    out_dim = w3.shape[1]

    # Matmul compute dtype: follow the (pre-cast) weights; cast only if needed
    # so prepared bf16 params incur zero per-call cast traffic.
    cdt = compute_dtype if compute_dtype is not None else w1.dtype
    zc = z if z.dtype == cdt else z.astype(cdt)
    w1c = w1 if w1.dtype == cdt else w1.astype(cdt)
    w2c = w2 if w2.dtype == cdt else w2.astype(cdt)
    w3c = w3 if w3.dtype == cdt else w3.astype(cdt)
    b1c = b1 if b1.dtype == jnp.float32 else b1.astype(jnp.float32)
    b2c = b2 if b2.dtype == jnp.float32 else b2.astype(jnp.float32)
    b3c = b3 if b3.dtype == jnp.float32 else b3.astype(jnp.float32)

    tb = batch_tile if batch_tile is not None else _pick_batch_tile(B, _num_tensorcores())
    B_pad = _round_up(B, tb)
    if B_pad != B:
        zc = jnp.pad(zc, ((0, B_pad - B), (0, 0)))

    grid = (B_pad // tb,)

    def wspec(shape):
        # Constant index_map -> block stays resident in VMEM across grid steps.
        return pl.BlockSpec(shape, lambda i: (0, 0))

    in_specs = [
        pl.BlockSpec((tb, latent_dim), lambda i: (i, 0)),  # z, pipelined over batch
        wspec((latent_dim, h1_dim)),                       # w1
        wspec((1, h1_dim)),                                # b1
        wspec((h1_dim, h0_dim)),                           # w2
        wspec((1, h0_dim)),                                # b2
        wspec((h0_dim, out_dim)),                          # w3
        wspec((1, out_dim)),                               # b3
    ]
    out_specs = pl.BlockSpec((tb, out_dim), lambda i: (i, 0))

    # Explicit VMEM budget with 2x headroom, capped at 48 MiB (< v7x's 64 MiB
    # physical per-TC VMEM, leaving room for Mosaic internal scratch).
    wsize = jnp.dtype(cdt).itemsize
    osize = jnp.dtype(out_dtype).itemsize
    weight_bytes = wsize * (latent_dim * h1_dim + h1_dim * h0_dim + h0_dim * out_dim)
    bias_bytes = 4 * (h1_dim + h0_dim + out_dim)
    io_bytes = 2 * (wsize * tb * latent_dim) + 2 * (osize * tb * out_dim)
    act_bytes = 4 * tb * (h1_dim + h0_dim + out_dim)
    vmem_needed = 2 * weight_bytes + 2 * bias_bytes + io_bytes + act_bytes
    vmem_limit = int(min(max(2 * vmem_needed, 8 * 1024 * 1024), 48 * 1024 * 1024))

    flops = 2 * B_pad * (latent_dim * h1_dim + h1_dim * h0_dim + h0_dim * out_dim)
    transcendentals = B_pad * out_dim  # sigmoid
    bytes_accessed = (B_pad * latent_dim * wsize + weight_bytes + bias_bytes
                      + B_pad * out_dim * osize)
    cost = pl.CostEstimate(flops=flops, transcendentals=transcendentals,
                           bytes_accessed=bytes_accessed)

    out = pl.pallas_call(
        decoder_kernel,
        out_shape=jax.ShapeDtypeStruct((B_pad, out_dim), out_dtype),
        grid_spec=pl.GridSpec(grid=grid, in_specs=in_specs, out_specs=out_specs),
        compiler_params=pltpu.CompilerParams(
            dimension_semantics=("parallel",),
            vmem_limit_bytes=vmem_limit,
        ),
        cost_estimate=cost,
    )(zc, w1c, b1c, w2c, b2c, w3c, b3c)

    return out[:B] if B_pad != B else out


# --------------------------------------------------------------------------- #
# Init + reference
# --------------------------------------------------------------------------- #
def init_decoder_params(key, latent_dim, hidden_dim, input_dim):
    """Mirrors Decoder._initialize_weights: N(0, 0.1) weights, zero biases.

    hidden_dim is [h0, h1], matching the PyTorch module:
      fc1: latent_dim -> hidden_dim[1]
      fc2: hidden_dim[1] -> hidden_dim[0]
      fc3: hidden_dim[0] -> input_dim
    Weights are returned already transposed to (in, out)."""
    h0, h1 = hidden_dim
    k1, k2, k3 = jax.random.split(key, 3)
    w1 = 0.1 * jax.random.normal(k1, (latent_dim, h1), dtype=jnp.float32)
    b1 = jnp.zeros((1, h1), dtype=jnp.float32)
    w2 = 0.1 * jax.random.normal(k2, (h1, h0), dtype=jnp.float32)
    b2 = jnp.zeros((1, h0), dtype=jnp.float32)
    w3 = 0.1 * jax.random.normal(k3, (h0, input_dim), dtype=jnp.float32)
    b3 = jnp.zeros((1, input_dim), dtype=jnp.float32)
    return w1, b1, w2, b2, w3, b3


def decoder_reference(z, w1, b1, w2, b2, w3, b3, compute_dtype=None):
    """Pure-JAX reference. If compute_dtype is set, quantize each matmul's
    operands to that dtype (mirroring the kernel) but accumulate in f32."""
    def mm(x, w):
        if compute_dtype is not None:
            x = x.astype(compute_dtype).astype(jnp.float32)
            w = w.astype(compute_dtype).astype(jnp.float32)
        return jnp.dot(x, w, preferred_element_type=jnp.float32)

    h1 = jax.nn.relu(mm(z, w1) + b1)
    h2 = jax.nn.relu(mm(h1, w2) + b2)
    return jax.nn.sigmoid(mm(h2, w3) + b3)


# --------------------------------------------------------------------------- #
# Demo / self-test
# --------------------------------------------------------------------------- #
if __name__ == "__main__":
    # Shapes consistent with the module's forward; hidden_dim = [h0, h1].
    batch = 256
    latent_dim = 32
    hidden_dim = [128, 64]
    input_dim = 256

    key = jax.random.PRNGKey(0)
    kz, kp = jax.random.split(key)
    z = jax.random.normal(kz, (batch, latent_dim), dtype=jnp.float32)
    raw_params = init_decoder_params(kp, latent_dim, hidden_dim, input_dim)

    # One-time parameter prep (bf16 cast + exact zero-padding of hidden dims),
    # hoisted out of the per-call forward path.
    params = prepare_decoder_params(*raw_params)

    out = decoder_forward(z, *params)          # f32 output (PyTorch parity)
    out = jax.block_until_ready(out)

    # Reference with the same bf16 operand quantization (tight match), plus a
    # looser check against the full-f32 reference for semantic parity.
    ref_bf16 = decoder_reference(z, *raw_params, compute_dtype=jnp.bfloat16)
    ref_f32 = decoder_reference(z, *raw_params)

    assert out.shape == (batch, input_dim)
    assert out.dtype == jnp.float32
    assert jnp.allclose(out, ref_bf16, atol=2e-3, rtol=2e-3)
    assert jnp.allclose(out, ref_f32, atol=3e-2, rtol=3e-2)

    # Optional low-HBM-traffic variant: bf16 output (sigmoid range [0,1]).
    out_bf16 = jax.block_until_ready(decoder_forward(z, *params, out_dtype=jnp.bfloat16))
    assert out_bf16.dtype == jnp.bfloat16
    assert jnp.allclose(out_bf16.astype(jnp.float32), ref_f32, atol=4e-2, rtol=4e-2)

    print("KERNEL_OK")
</pallas_src>

<mosaic_0001>
module attributes {stable_mosaic.version = 11 : i64} {
  func.func @decoder_kernel(%arg0: i32, %arg1: memref<256x32xbf16, #tpu.memory_space<vmem>>, %arg2: memref<32x128xbf16, #tpu.memory_space<vmem>>, %arg3: memref<1x128xf32, #tpu.memory_space<vmem>>, %arg4: memref<128x128xbf16, #tpu.memory_space<vmem>>, %arg5: memref<1x128xf32, #tpu.memory_space<vmem>>, %arg6: memref<128x256xbf16, #tpu.memory_space<vmem>>, %arg7: memref<1x256xf32, #tpu.memory_space<vmem>>, %arg8: memref<256x256xf32, #tpu.memory_space<vmem>>) attributes {dimension_semantics = [#tpu.dimension_semantics<parallel>], iteration_bounds = array<i64: 1>, scalar_prefetch = 0 : i64, scratch_operands = 0 : i64, tpu.core_type = #tpu.core_type<tc>, window_params = [{transform_indices = @transform_0, window_bounds = array<i64: 256, 32>}, {pipeline_mode = #tpu.pipeline_mode<synchronous>, transform_indices = @transform_1, window_bounds = array<i64: 32, 128>}, {pipeline_mode = #tpu.pipeline_mode<synchronous>, transform_indices = @transform_2, window_bounds = array<i64: 1, 128>}, {pipeline_mode = #tpu.pipeline_mode<synchronous>, transform_indices = @transform_3, window_bounds = array<i64: 128, 128>}, {pipeline_mode = #tpu.pipeline_mode<synchronous>, transform_indices = @transform_4, window_bounds = array<i64: 1, 128>}, {pipeline_mode = #tpu.pipeline_mode<synchronous>, transform_indices = @transform_5, window_bounds = array<i64: 128, 256>}, {pipeline_mode = #tpu.pipeline_mode<synchronous>, transform_indices = @transform_6, window_bounds = array<i64: 1, 256>}, {transform_indices = @transform_7, window_bounds = array<i64: 256, 256>}]} {
    %c0 = arith.constant 0 : index
    %c0_0 = arith.constant 0 : index
    %0 = vector.load %arg1[%c0, %c0_0] : memref<256x32xbf16, #tpu.memory_space<vmem>>, vector<256x32xbf16>
    %c0_1 = arith.constant 0 : index
    %c0_2 = arith.constant 0 : index
    %1 = vector.load %arg2[%c0_1, %c0_2] : memref<32x128xbf16, #tpu.memory_space<vmem>>, vector<32x128xbf16>
    %cst = arith.constant dense<0.000000e+00> : vector<256x128xf32>
    %2 = tpu.matmul %0, %1, %cst {dimension_numbers = #tpu.dot_dimension_numbers<[1], [0], [0], [1], [0, 0, 1, 1], [], []>} : vector<256x32xbf16>, vector<32x128xbf16>, vector<256x128xf32> -> vector<256x128xf32>
    %c0_3 = arith.constant 0 : index
    %c0_4 = arith.constant 0 : index
    %3 = vector.load %arg3[%c0_3, %c0_4] : memref<1x128xf32, #tpu.memory_space<vmem>>, vector<1x128xf32>
    %4 = vector.broadcast %3 : vector<1x128xf32> to vector<256x128xf32>
    %5 = arith.addf %2, %4 : vector<256x128xf32>
    %cst_5 = arith.constant 0.000000e+00 : f32
    %6 = vector.broadcast %cst_5 : f32 to vector<256x128xf32>
    %7 = arith.maximumf %5, %6 : vector<256x128xf32>
    %8 = arith.truncf %7 : vector<256x128xf32> to vector<256x128xbf16>
    %c0_6 = arith.constant 0 : index
    %c0_7 = arith.constant 0 : index
    %9 = vector.load %arg4[%c0_6, %c0_7] : memref<128x128xbf16, #tpu.memory_space<vmem>>, vector<128x128xbf16>
    %cst_8 = arith.constant dense<0.000000e+00> : vector<256x128xf32>
    %10 = tpu.matmul %8, %9, %cst_8 {dimension_numbers = #tpu.dot_dimension_numbers<[1], [0], [0], [1], [0, 0, 1, 1], [], []>} : vector<256x128xbf16>, vector<128x128xbf16>, vector<256x128xf32> -> vector<256x128xf32>
    %c0_9 = arith.constant 0 : index
    %c0_10 = arith.constant 0 : index
    %11 = vector.load %arg5[%c0_9, %c0_10] : memref<1x128xf32, #tpu.memory_space<vmem>>, vector<1x128xf32>
    %12 = vector.broadcast %11 : vector<1x128xf32> to vector<256x128xf32>
    %13 = arith.addf %10, %12 : vector<256x128xf32>
    %cst_11 = arith.constant 0.000000e+00 : f32
    %14 = vector.broadcast %cst_11 : f32 to vector<256x128xf32>
    %15 = arith.maximumf %13, %14 : vector<256x128xf32>
    %16 = arith.truncf %15 : vector<256x128xf32> to vector<256x128xbf16>
    %c0_12 = arith.constant 0 : index
    %c0_13 = arith.constant 0 : index
    %17 = vector.load %arg6[%c0_12, %c0_13] : memref<128x256xbf16, #tpu.memory_space<vmem>>, vector<128x256xbf16>
    %cst_14 = arith.constant dense<0.000000e+00> : vector<256x256xf32>
    %18 = tpu.matmul %16, %17, %cst_14 {dimension_numbers = #tpu.dot_dimension_numbers<[1], [0], [0], [1], [0, 0, 1, 1], [], []>} : vector<256x128xbf16>, vector<128x256xbf16>, vector<256x256xf32> -> vector<256x256xf32>
    %c0_15 = arith.constant 0 : index
    %c0_16 = arith.constant 0 : index
    %19 = vector.load %arg7[%c0_15, %c0_16] : memref<1x256xf32, #tpu.memory_space<vmem>>, vector<1x256xf32>
    %20 = vector.broadcast %19 : vector<1x256xf32> to vector<256x256xf32>
    %21 = arith.addf %18, %20 : vector<256x256xf32>
    %22 = arith.negf %21 : vector<256x256xf32>
    %23 = math.exp %22 : vector<256x256xf32>
    %cst_17 = arith.constant 1.000000e+00 : f32
    %24 = vector.broadcast %cst_17 : f32 to vector<256x256xf32>
    %25 = arith.addf %24, %23 : vector<256x256xf32>
    %26 = arith.divf %24, %25 : vector<256x256xf32>
    %c0_18 = arith.constant 0 : index
    %c0_19 = arith.constant 0 : index
    %27 = vector.load %arg8[%c0_18, %c0_19] : memref<256x256xf32, #tpu.memory_space<vmem>>, vector<256x256xf32>
    tpu.vector_store %arg8[%c0_18, %c0_19], %26 {strides = array<i32>} : memref<256x256xf32, #tpu.memory_space<vmem>>, vector<256x256xf32>,
    return
  }
  func.func @transform_0(%arg0: i32) -> (i32, i32) {
    %c0_i32 = arith.constant 0 : i32
    %c0_i32_0 = arith.constant 0 : i32
    return %arg0, %c0_i32 : i32, i32
  }
  func.func @transform_1(%arg0: i32) -> (i32, i32) {
    %c0_i32 = arith.constant 0 : i32
    %c0_i32_0 = arith.constant 0 : i32
    %c0_i32_1 = arith.constant 0 : i32
    return %c0_i32, %c0_i32_0 : i32, i32
  }
  func.func @transform_2(%arg0: i32) -> (i32, i32) {
    %c0_i32 = arith.constant 0 : i32
    %c0_i32_0 = arith.constant 0 : i32
    %c0_i32_1 = arith.constant 0 : i32
    return %c0_i32, %c0_i32_0 : i32, i32
  }
  func.func @transform_3(%arg0: i32) -> (i32, i32) {
    %c0_i32 = arith.constant 0 : i32
    %c0_i32_0 = arith.constant 0 : i32
    %c0_i32_1 = arith.constant 0 : i32
    return %c0_i32, %c0_i32_0 : i32, i32
  }
  func.func @transform_4(%arg0: i32) -> (i32, i32) {
    %c0_i32 = arith.constant 0 : i32
    %c0_i32_0 = arith.constant 0 : i32
    %c0_i32_1 = arith.constant 0 : i32
    return %c0_i32, %c0_i32_0 : i32, i32
  }
  func.func @transform_5(%arg0: i32) -> (i32, i32) {
    %c0_i32 = arith.constant 0 : i32
    %c0_i32_0 = arith.constant 0 : i32
    %c0_i32_1 = arith.constant 0 : i32
    return %c0_i32, %c0_i32_0 : i32, i32
  }
  func.func @transform_6(%arg0: i32) -> (i32, i32) {
    %c0_i32 = arith.constant 0 : i32
    %c0_i32_0 = arith.constant 0 : i32
    %c0_i32_1 = arith.constant 0 : i32
    return %c0_i32, %c0_i32_0 : i32, i32
  }
  func.func @transform_7(%arg0: i32) -> (i32, i32) {
    %c0_i32 = arith.constant 0 : i32
    %c0_i32_0 = arith.constant 0 : i32
    return %arg0, %c0_i32 : i32, i32
  }
}

</mosaic_0001>

<llo_original>
// kernel: tpu_custom_call.1
$region0: #{tpu_custom_call.1}
  #allocation0 [shape = 'u32[]', space=smem, size = 0x4, offset = 0x4, fixed_abs, tag = 'smem constant byte address 0x4 - core index']
  #allocation1 [shape = 'u32[144,128]{1,0:T(1,128)}', space=vmem, size = 0x12000, scoped, tag = 'internal scratch']
  %s0 = inlined_call_operand.vmem [shape: bf16[256,32], index: 0, kind: input, shape index: {}]
  %s1 = inlined_call_operand.vmem [shape: bf16[32,128], index: 1, kind: input, shape index: {}]
  %s2 = inlined_call_operand.vmem [shape: f32[1,128], index: 2, kind: input, shape index: {}]
  %s3 = inlined_call_operand.hbm [shape: bf16[128,128], index: 3, kind: input, shape index: {}]
  %s4 = inlined_call_operand.vmem [shape: f32[1,128], index: 4, kind: input, shape index: {}]
  %s5 = inlined_call_operand.vmem [shape: bf16[128,256], index: 5, kind: input, shape index: {}]
  %s6 = inlined_call_operand.vmem [shape: f32[1,256], index: 6, kind: input, shape index: {}]
  %s7 = inlined_call_operand.hbm [shape: f32[256,256], index: 7, kind: output, shape index: {}]
  %s8 = sld [smem:[#allocation0]]
  $region42: #{tpu_custom_call.1} parent=0
    _
  %s10 = ssub.s32 1, %s8
  %s11 = scalar_select 0, %s10, %s8
  $region1: #{tpu_custom_call.1} parent=0
    #allocation2 [shape = 'u8[32768]{0}', space=vmem, size = 0x8000, scoped, tag = 'input window, operand 3, single buffered']
    #allocation3 [shape = 's32[1]{0}', space=sflag, size = 0x4, scoped, tag = 'scoped memory for tpu_custom_call.1']
    #allocation4 [shape = 's32[1]{0}', space=sflag, size = 0x4, scoped, tag = 'scoped memory for tpu_custom_call.1']
    #allocation5 [shape = 'u8[262144]{0}', space=vmem, size = 0x40000, scoped, tag = 'output window, operand 0, single buffered']
    %12 = vsyncpa [#allocation3], 0
    %13 = vsyncpa [#allocation4], 0
    // Predicated region
    $region2: #{tpu_custom_call.1} parent=1 // pred_check
      _
    $region3: #{tpu_custom_call.1} parent=1 // pred_check_branch
      %15 = sbr.rel (0) target = $region5
    $region4: #{tpu_custom_call.1} parent=1 // pred_region
      _
    $region5: #{tpu_custom_call.1} parent=1 // pred_fallthru
      _
    // Predicated region
    $region6: #{tpu_custom_call.1} parent=1 // pred_check
      _
    $region7: #{tpu_custom_call.1} parent=1 // pred_check_branch
      %17 = sbr.rel (0) target = $region9
    $region8: #{tpu_custom_call.1} parent=1 // pred_region
      _
    $region9: #{tpu_custom_call.1} parent=1 // pred_fallthru
      _
    // Predicated region
    $region10: #{tpu_custom_call.1} parent=1 // pred_check
      _
    $region11: #{tpu_custom_call.1} parent=1 // pred_check_branch
      %19 = sbr.rel (0) target = $region13
    $region12: #{tpu_custom_call.1} parent=1 // pred_region
      _
    $region13: #{tpu_custom_call.1} parent=1 // pred_fallthru
      _
    // Predicated region
    $region14: #{tpu_custom_call.1} parent=1 // pred_check
      _
    $region15: #{tpu_custom_call.1} parent=1 // pred_check_branch
      %21 = sbr.rel (0) target = $region17
    $region16: #{tpu_custom_call.1} parent=1 // pred_region
      %s23 = ssub.s32 1024, 1024
      %24 = vsyncadd [#allocation3], %s23
      %s25 = sshll.u32 [#allocation2], 4
      %s26 = int_to_ptr.vmem [resolvable:$true] %s25
      %31 = dma.hbm_to_vmem [thread:$0]  %s3, 1024, %s26, [#allocation3], 64, 64, 4
    $region17: #{tpu_custom_call.1} parent=1 // pred_fallthru
      _
    // Predicated region
    $region18: #{tpu_custom_call.1} parent=1 // pred_check
      _
    $region19: #{tpu_custom_call.1} parent=1 // pred_check_branch
      %33 = sbr.rel (0) target = $region21
    $region20: #{tpu_custom_call.1} parent=1 // pred_region
      _
    $region21: #{tpu_custom_call.1} parent=1 // pred_fallthru
      _
    // Predicated region
    $region22: #{tpu_custom_call.1} parent=1 // pred_check
      _
    $region23: #{tpu_custom_call.1} parent=1 // pred_check_branch
      %35 = sbr.rel (0) target = $region25
    $region24: #{tpu_custom_call.1} parent=1 // pred_region
      _
    $region25: #{tpu_custom_call.1} parent=1 // pred_fallthru
      _
    // Predicated region
    $region26: #{tpu_custom_call.1} parent=1 // pred_check
      _
    $region27: #{tpu_custom_call.1} parent=1 // pred_check_branch
      %37 = sbr.rel (0) target = $region29
    $region28: #{tpu_custom_call.1} parent=1 // pred_region
      _
    $region29: #{tpu_custom_call.1} parent=1 // pred_fallthru
      _
    // Predicated region
    $region30: #{tpu_custom_call.1} parent=1 // pred_check
      _
    $region31: #{tpu_custom_call.1} parent=1 // pred_check_branch
      %39 = sbr.rel (0) target = $region33
    $region32: #{tpu_custom_call.1} parent=1 // pred_region
      %40 = dma.done [#allocation3], 1024
    $region33: #{tpu_custom_call.1} parent=1 // pred_fallthru
      _
    %v42 = vld [vmem:[%s0] sm:$0xf]
    %v43 = vld [vmem:[%s0 + $0x4] sm:$0xf]
    %v44 = vld [vmem:[%s0 + $0x8] sm:$0xf]
    %v45 = vld [vmem:[%s0 + $0xc] sm:$0xf]
    %v46 = vld [vmem:[%s0 + $0x10] sm:$0xf]
    %v47 = vld [vmem:[%s0 + $0x14] sm:$0xf]
    %v48 = vld [vmem:[%s0 + $0x18] sm:$0xf]
    %v49 = vld [vmem:[%s0 + $0x1c] sm:$0xf]
    %v50 = vld [vmem:[%s0 + $0x20] sm:$0xf]
    %v51 = vld [vmem:[%s0 + $0x24] sm:$0xf]
    %v52 = vld [vmem:[%s0 + $0x28] sm:$0xf]
    %v53 = vld [vmem:[%s0 + $0x2c] sm:$0xf]
    %v54 = vld [vmem:[%s0 + $0x30] sm:$0xf]
    %v55 = vld [vmem:[%s0 + $0x34] sm:$0xf]
    %v56 = vld [vmem:[%s0 + $0x38] sm:$0xf]
    %v57 = vld [vmem:[%s0 + $0x3c] sm:$0xf]
    %v58 = vld [vmem:[%s0 + $0x40] sm:$0xf]
    %v59 = vld [vmem:[%s0 + $0x44] sm:$0xf]
    %v60 = vld [vmem:[%s0 + $0x48] sm:$0xf]
    %v61 = vld [vmem:[%s0 + $0x4c] sm:$0xf]
    %v62 = vld [vmem:[%s0 + $0x50] sm:$0xf]
    %v63 = vld [vmem:[%s0 + $0x54] sm:$0xf]
    %v64 = vld [vmem:[%s0 + $0x58] sm:$0xf]
    %v65 = vld [vmem:[%s0 + $0x5c] sm:$0xf]
    %v66 = vld [vmem:[%s0 + $0x60] sm:$0xf]
    %v67 = vld [vmem:[%s0 + $0x64] sm:$0xf]
    %v68 = vld [vmem:[%s0 + $0x68] sm:$0xf]
    %v69 = vld [vmem:[%s0 + $0x6c] sm:$0xf]
    %v70 = vld [vmem:[%s0 + $0x70] sm:$0xf]
    %v71 = vld [vmem:[%s0 + $0x74] sm:$0xf]
    %v72 = vld [vmem:[%s0 + $0x78] sm:$0xf]
    %v73 = vld [vmem:[%s0 + $0x7c] sm:$0xf]
    %v74 = vld [vmem:[%s1] sm:$0xf]
    %v75 = vld [vmem:[%s1 + $0x4] sm:$0xf]
    %v76 = vld [vmem:[%s1 + $0x8] sm:$0xf]
    %v77 = vld [vmem:[%s1 + $0xc] sm:$0xf]
    %v78 = vld [vmem:[%s2] sm:$0x1]
    %v80 = vlaneseq
    %v81 = vshrl.u32 %v80, 7
    %v82 = vsub.s32 0, %v81
    %v83 = vrot.slane %v78, %v82
    %v117 = vunpack.c.l.b16 %v42
    %v118 = vunpack.c.l.b16 %v43
    %v119 = vunpack.c.l.b16 %v44
    %v120 = vunpack.c.l.b16 %v45
    %v121 = vunpack.c.l.b16 %v46
    %v122 = vunpack.c.l.b16 %v47
    %v123 = vunpack.c.l.b16 %v48
    %v124 = vunpack.c.l.b16 %v49
    %v125 = vunpack.c.l.b16 %v50
    %v126 = vunpack.c.l.b16 %v51
    %v127 = vunpack.c.l.b16 %v52
    %v128 = vunpack.c.l.b16 %v53
    %v129 = vunpack.c.l.b16 %v54
    %v130 = vunpack.c.l.b16 %v55
    %v131 = vunpack.c.l.b16 %v56
    %v132 = vunpack.c.l.b16 %v57
    %v133 = vunpack.c.l.b16 %v58
    %v134 = vunpack.c.l.b16 %v59
    %v135 = vunpack.c.l.b16 %v60
    %v136 = vunpack.c.l.b16 %v61
    %v137 = vunpack.c.l.b16 %v62
    %v138 = vunpack.c.l.b16 %v63
    %v139 = vunpack.c.l.b16 %v64
    %v140 = vunpack.c.l.b16 %v65
    %v141 = vunpack.c.l.b16 %v66
    %v142 = vunpack.c.l.b16 %v67
    %v143 = vunpack.c.l.b16 %v68
    %v144 = vunpack.c.l.b16 %v69
    %v145 = vunpack.c.l.b16 %v70
    %v146 = vunpack.c.l.b16 %v71
    %v147 = vunpack.c.l.b16 %v72
    %v148 = vunpack.c.l.b16 %v73
    %v149 = vpack.c.b16 %v118, %v117
    %v150 = vpack.c.b16 %v120, %v119
    %v151 = vpack.c.b16 %v122, %v121
    %v152 = vpack.c.b16 %v124, %v123
    %v153 = vpack.c.b16 %v126, %v125
    %v154 = vpack.c.b16 %v128, %v127
    %v155 = vpack.c.b16 %v130, %v129
    %v156 = vpack.c.b16 %v132, %v131
    %v157 = vpack.c.b16 %v134, %v133
    %v158 = vpack.c.b16 %v136, %v135
    %v159 = vpack.c.b16 %v138, %v137
    %v160 = vpack.c.b16 %v140, %v139
    %v161 = vpack.c.b16 %v142, %v141
    %v162 = vpack.c.b16 %v144, %v143
    %v163 = vpack.c.b16 %v146, %v145
    %v164 = vpack.c.b16 %v148, %v147
    %v169 = vunpack.c.l.b16 %v74
    %v170 = vunpack.c.l.b16 %v75
    %v171 = vunpack.c.l.b16 %v76
    %v172 = vunpack.c.l.b16 %v77
    %v173 = vpack.c.b16 %v170, %v169
    %v174 = vpack.c.b16 %v172, %v171
    %vm177 = vcmask 261120
    %v179 = vsel %vm177, %v149, 0
    %v182 = vsel %vm177, %v150, 0
    %v185 = vsel %vm177, %v151, 0
    %v188 = vsel %vm177, %v152, 0
    %v191 = vsel %vm177, %v153, 0
    %v194 = vsel %vm177, %v154, 0
    %v197 = vsel %vm177, %v155, 0
    %v200 = vsel %vm177, %v156, 0
    %v203 = vsel %vm177, %v157, 0
    %v206 = vsel %vm177, %v158, 0
    %v209 = vsel %vm177, %v159, 0
    %v212 = vsel %vm177, %v160, 0
    %v215 = vsel %vm177, %v161, 0
    %v218 = vsel %vm177, %v162, 0
    %v221 = vsel %vm177, %v163, 0
    %v224 = vsel %vm177, %v164, 0
    %226 = vmatprep.subr.bf16.mxu0 0
    %227 = vmatpush1.bf16.msra.mxu0 %v173
    %228 = vmatprep.subr.bf16.mxu0 0
    %229 = vmatpush1.bf16.msra.mxu0 %v174
    %230 = vmatprep.subr.bf16.mxu0 0
    %231 = vmatpush1.bf16.msra.mxu0 0
    %232 = vmatprep.subr.bf16.mxu0 0
    %233 = vmatpush1.bf16.msra.mxu0 0
    %234 = vmatprep.subr.bf16.mxu0 0
    %235 = vmatpush1.bf16.msra.mxu0 0
    %236 = vmatprep.subr.bf16.mxu0 0
    %237 = vmatpush1.bf16.msra.mxu0 0
    %238 = vmatprep.subr.bf16.mxu0 0
    %239 = vmatpush1.bf16.msra.mxu0 0
    %240 = vmatprep.subr.bf16.mxu0 0
    %241 = vmatpush1.bf16.msra.mxu0 0
    %242 = vmatprep.subr.bf16.mxu0 0
    %243 = vmatpush1.bf16.msra.mxu0 0
    %244 = vmatprep.subr.bf16.mxu0 0
    %245 = vmatpush1.bf16.msra.mxu0 0
    %246 = vmatprep.subr.bf16.mxu0 0
    %247 = vmatpush1.bf16.msra.mxu0 0
    %248 = vmatprep.subr.bf16.mxu0 0
    %249 = vmatpush1.bf16.msra.mxu0 0
    %250 = vmatprep.subr.bf16.mxu0 0
    %251 = vmatpush1.bf16.msra.mxu0 0
    %252 = vmatprep.subr.bf16.mxu0 0
    %253 = vmatpush1.bf16.msra.mxu0 0
    %254 = vmatprep.subr.bf16.mxu0 0
    %255 = vmatpush1.bf16.msra.mxu0 0
    %256 = vmatprep.subr.bf16.mxu0 0
    %257 = vmatpush1.bf16.msra.mxu0 0
    %258 = vmatprep.mubr.bf16.mxu0 0
    %259 = vmatmul.mubr.bf16.gmra.mrb[0].mxu0 %v179
    %v260 = vpop.f32.mrb[0].mxu0
    %v261 = vadd.f32 %v83, %v260
    %v262 = vpop.f32.mrb[0].mxu0
    %v263 = vpop.f32.mrb[0].mxu0
    %v264 = vadd.f32 %v83, %v263
    %v265 = vpop.f32.mrb[0].mxu0
    %266 = vmatprep.mubr.bf16.mxu0 0
    %267 = vmatmul.mubr.bf16.gmra.mrb[0].mxu0 %v182
    %v268 = vpop.f32.mrb[0].mxu0
    %v269 = vadd.f32 %v83, %v268
    %v270 = vpop.f32.mrb[0].mxu0
    %v271 = vpop.f32.mrb[0].mxu0
    %v272 = vadd.f32 %v83, %v271
    %v273 = vpop.f32.mrb[0].mxu0
    %274 = vmatprep.mubr.bf16.mxu0 0
    %275 = vmatmul.mubr.bf16.gmra.mrb[0].mxu0 %v185
    %v276 = vpop.f32.mrb[0].mxu0
    %v277 = vadd.f32 %v83, %v276
    %v278 = vpop.f32.mrb[0].mxu0
    %v279 = vpop.f32.mrb[0].mxu0
    %v280 = vadd.f32 %v83, %v279
    %v281 = vpop.f32.mrb[0].mxu0
    %282 = vmatprep.mubr.bf16.mxu0 0
    %283 = vmatmul.mubr.bf16.gmra.mrb[0].mxu0 %v188
    %v284 = vpop.f32.mrb[0].mxu0
    %v285 = vadd.f32 %v83, %v284
    %v286 = vpop.f32.mrb[0].mxu0
    %v287 = vpop.f32.mrb[0].mxu0
    %v288 = vadd.f32 %v83, %v287
    %v289 = vpop.f32.mrb[0].mxu0
    %290 = vmatprep.mubr.bf16.mxu0 0
    %291 = vmatmul.mubr.bf16.gmra.mrb[0].mxu0 %v191
    %v292 = vpop.f32.mrb[0].mxu0
    %v293 = vadd.f32 %v83, %v292
    %v294 = vpop.f32.mrb[0].mxu0
    %v295 = vpop.f32.mrb[0].mxu0
    %v296 = vadd.f32 %v83, %v295
    %v297 = vpop.f32.mrb[0].mxu0
    %298 = vmatprep.mubr.bf16.mxu0 0
    %299 = vmatmul.mubr.bf16.gmra.mrb[0].mxu0 %v194
    %v300 = vpop.f32.mrb[0].mxu0
    %v301 = vadd.f32 %v83, %v300
    %v302 = vpop.f32.mrb[0].mxu0
    %v303 = vpop.f32.mrb[0].mxu0
    %v304 = vadd.f32 %v83, %v303
    %v305 = vpop.f32.mrb[0].mxu0
    %306 = vmatprep.mubr.bf16.mxu0 0
    %307 = vmatmul.mubr.bf16.gmra.mrb[0].mxu0 %v197
    %v308 = vpop.f32.mrb[0].mxu0
    %v309 = vadd.f32 %v83, %v308
    %v310 = vpop.f32.mrb[0].mxu0
    %v311 = vpop.f32.mrb[0].mxu0
    %v312 = vadd.f32 %v83, %v311
    %v313 = vpop.f32.mrb[0].mxu0
    %314 = vmatprep.mubr.bf16.mxu0 0
    %315 = vmatmul.mubr.bf16.gmra.mrb[0].mxu0 %v200
    %v316 = vpop.f32.mrb[0].mxu0
    %v317 = vadd.f32 %v83, %v316
    %v318 = vpop.f32.mrb[0].mxu0
    %v319 = vpop.f32.mrb[0].mxu0
    %v320 = vadd.f32 %v83, %v319
    %v321 = vpop.f32.mrb[0].mxu0
    %322 = vmatprep.mubr.bf16.mxu0 0
    %323 = vmatmul.mubr.bf16.gmra.mrb[0].mxu0 %v203
    %v324 = vpop.f32.mrb[0].mxu0
    %v325 = vadd.f32 %v83, %v324
    %v326 = vpop.f32.mrb[0].mxu0
    %v327 = vpop.f32.mrb[0].mxu0
    %v328 = vadd.f32 %v83, %v327
    %v329 = vpop.f32.mrb[0].mxu0
    %330 = vmatprep.mubr.bf16.mxu0 0
    %331 = vmatmul.mubr.bf16.gmra.mrb[0].mxu0 %v206
    %v332 = vpop.f32.mrb[0].mxu0
    %v333 = vadd.f32 %v83, %v332
    %v334 = vpop.f32.mrb[0].mxu0
    %v335 = vpop.f32.mrb[0].mxu0
    %v336 = vadd.f32 %v83, %v335
    %v337 = vpop.f32.mrb[0].mxu0
    %338 = vmatprep.mubr.bf16.mxu0 0
    %339 = vmatmul.mubr.bf16.gmra.mrb[0].mxu0 %v209
    %v340 = vpop.f32.mrb[0].mxu0
    %v341 = vadd.f32 %v83, %v340
    %v342 = vpop.f32.mrb[0].mxu0
    %v343 = vpop.f32.mrb[0].mxu0
    %v344 = vadd.f32 %v83, %v343
    %v345 = vpop.f32.mrb[0].mxu0
    %346 = vmatprep.mubr.bf16.mxu0 0
    %347 = vmatmul.mubr.bf16.gmra.mrb[0].mxu0 %v212
    %v348 = vpop.f32.mrb[0].mxu0
    %v349 = vadd.f32 %v83, %v348
    %v350 = vpop.f32.mrb[0].mxu0
    %v351 = vpop.f32.mrb[0].mxu0
    %v352 = vadd.f32 %v83, %v351
    %v353 = vpop.f32.mrb[0].mxu0
    %354 = vmatprep.mubr.bf16.mxu0 0
    %355 = vmatmul.mubr.bf16.gmra.mrb[0].mxu0 %v215
    %v356 = vpop.f32.mrb[0].mxu0
    %v357 = vadd.f32 %v83, %v356
    %v358 = vpop.f32.mrb[0].mxu0
    %v359 = vpop.f32.mrb[0].mxu0
    %v360 = vadd.f32 %v83, %v359
    %v361 = vpop.f32.mrb[0].mxu0
    %362 = vmatprep.mubr.bf16.mxu0 0
    %363 = vmatmul.mubr.bf16.gmra.mrb[0].mxu0 %v218
    %v364 = vpop.f32.mrb[0].mxu0
    %v365 = vadd.f32 %v83, %v364
    %v366 = vpop.f32.mrb[0].mxu0
    %v367 = vpop.f32.mrb[0].mxu0
    %v368 = vadd.f32 %v83, %v367
    %v369 = vpop.f32.mrb[0].mxu0
    %370 = vmatprep.mubr.bf16.mxu0 0
    %371 = vmatmul.mubr.bf16.gmra.mrb[0].mxu0 %v221
    %v372 = vpop.f32.mrb[0].mxu0
    %v373 = vadd.f32 %v83, %v372
    %v374 = vpop.f32.mrb[0].mxu0
    %v375 = vpop.f32.mrb[0].mxu0
    %v376 = vadd.f32 %v83, %v375
    %v377 = vpop.f32.mrb[0].mxu0
    %378 = vmatprep.mubr.bf16.mxu0 0
    %379 = vmatmul.mubr.bf16.gmra.mrb[0].mxu0 %v224
    %v380 = vpop.f32.mrb[0].mxu0
    %v381 = vadd.f32 %v83, %v380
    %v382 = vpop.f32.mrb[0].mxu0
    %v383 = vpop.f32.mrb[0].mxu0
    %v384 = vadd.f32 %v83, %v383
    %v385 = vpop.f32.mrb[0].mxu0
    %386 = vdwg.mxu0
    %v387 = vmax.f32 %v261, 0.0
    %v388 = vmax.f32 %v264, 0.0
    %v389 = vmax.f32 %v269, 0.0
    %v390 = vmax.f32 %v272, 0.0
    %v391 = vmax.f32 %v277, 0.0
    %v392 = vmax.f32 %v280, 0.0
    %v393 = vmax.f32 %v285, 0.0
    %v394 = vmax.f32 %v288, 0.0
    %v395 = vmax.f32 %v293, 0.0
    %v396 = vmax.f32 %v296, 0.0
    %v397 = vmax.f32 %v301, 0.0
    %v398 = vmax.f32 %v304, 0.0
    %v399 = vmax.f32 %v309, 0.0
    %v400 = vmax.f32 %v312, 0.0
    %v401 = vmax.f32 %v317, 0.0
    %v402 = vmax.f32 %v320, 0.0
    %v403 = vmax.f32 %v325, 0.0
    %v404 = vmax.f32 %v328, 0.0
    %v405 = vmax.f32 %v333, 0.0
    %v406 = vmax.f32 %v336, 0.0
    %v407 = vmax.f32 %v341, 0.0
    %v408 = vmax.f32 %v344, 0.0
    %v409 = vmax.f32 %v349, 0.0
    %v410 = vmax.f32 %v352, 0.0
    %v411 = vmax.f32 %v357, 0.0
    %v412 = vmax.f32 %v360, 0.0
    %v413 = vmax.f32 %v365, 0.0
    %v414 = vmax.f32 %v368, 0.0
    %v415 = vmax.f32 %v373, 0.0
    %v416 = vmax.f32 %v376, 0.0
    %v417 = vmax.f32 %v381, 0.0
    %v418 = vmax.f32 %v384, 0.0
    %v419 = vpack.c.bf16 %v388, %v387
    %v420 = vpack.c.bf16 %v390, %v389
    %v421 = vpack.c.bf16 %v392, %v391
    %v422 = vpack.c.bf16 %v394, %v393
    %v423 = vpack.c.bf16 %v396, %v395
    %v424 = vpack.c.bf16 %v398, %v397
    %v425 = vpack.c.bf16 %v400, %v399
    %v426 = vpack.c.bf16 %v402, %v401
    %v427 = vpack.c.bf16 %v404, %v403
    %v428 = vpack.c.bf16 %v406, %v405
    %v429 = vpack.c.bf16 %v408, %v407
    %v430 = vpack.c.bf16 %v410, %v409
    %v431 = vpack.c.bf16 %v412, %v411
    %v432 = vpack.c.bf16 %v414, %v413
    %v433 = vpack.c.bf16 %v416, %v415
    %v434 = vpack.c.bf16 %v418, %v417
    %v435 = vld [vmem:[#allocation2] sm:$0xf]
    %v436 = vld [vmem:[#allocation2 + $0x4] sm:$0xf]
    %v437 = vld [vmem:[#allocation2 + $0x8] sm:$0xf]
    %v438 = vld [vmem:[#allocation2 + $0xc] sm:$0xf]
    %v439 = vld [vmem:[#allocation2 + $0x10] sm:$0xf]
    %v440 = vld [vmem:[#allocation2 + $0x14] sm:$0xf]
    %v441 = vld [vmem:[#allocation2 + $0x18] sm:$0xf]
    %v442 = vld [vmem:[#allocation2 + $0x1c] sm:$0xf]
    %v443 = vld [vmem:[#allocation2 + $0x20] sm:$0xf]
    %v444 = vld [vmem:[#allocation2 + $0x24] sm:$0xf]
    %v445 = vld [vmem:[#allocation2 + $0x28] sm:$0xf]
    %v446 = vld [vmem:[#allocation2 + $0x2c] sm:$0xf]
    %v447 = vld [vmem:[#allocation2 + $0x30] sm:$0xf]
    %v448 = vld [vmem:[#allocation2 + $0x34] sm:$0xf]
    %v449 = vld [vmem:[#allocation2 + $0x38] sm:$0xf]
    %v450 = vld [vmem:[#allocation2 + $0x3c] sm:$0xf]
    %v451 = vld [vmem:[%s4] sm:$0x1]
    %v453 = vlaneseq
    %v454 = vshrl.u32 %v453, 7
    %v455 = vsub.s32 0, %v454
    %v456 = vrot.slane %v451, %v455
    %v474 = vunpack.c.l.b16 %v435
    %v475 = vunpack.c.l.b16 %v436
    %v476 = vunpack.c.l.b16 %v437
    %v477 = vunpack.c.l.b16 %v438
    %v478 = vunpack.c.l.b16 %v439
    %v479 = vunpack.c.l.b16 %v440
    %v480 = vunpack.c.l.b16 %v441
    %v481 = vunpack.c.l.b16 %v442
    %v482 = vunpack.c.l.b16 %v443
    %v483 = vunpack.c.l.b16 %v444
    %v484 = vunpack.c.l.b16 %v445
    %v485 = vunpack.c.l.b16 %v446
    %v486 = vunpack.c.l.b16 %v447
    %v487 = vunpack.c.l.b16 %v448
    %v488 = vunpack.c.l.b16 %v449
    %v489 = vunpack.c.l.b16 %v450
    %v490 = vpack.c.b16 %v475, %v474
    %v491 = vpack.c.b16 %v477, %v476
    %v492 = vpack.c.b16 %v479, %v478
    %v493 = vpack.c.b16 %v481, %v480
    %v494 = vpack.c.b16 %v483, %v482
    %v495 = vpack.c.b16 %v485, %v484
    %v496 = vpack.c.b16 %v487, %v486
    %v497 = vpack.c.b16 %v489, %v488
    %506 = vmatprep.subr.bf16.mxu0 0
    %507 = vmatpush1.bf16.msra.mxu0 %v490
    %508 = vmatprep.subr.bf16.mxu0 0
    %509 = vmatpush1.bf16.msra.mxu0 %v491
    %510 = vmatprep.subr.bf16.mxu0 0
    %511 = vmatpush1.bf16.msra.mxu0 %v492
    %512 = vmatprep.subr.bf16.mxu0 0
    %513 = vmatpush1.bf16.msra.mxu0 %v493
    %514 = vmatprep.subr.bf16.mxu0 0
    %515 = vmatpush1.bf16.msra.mxu0 %v494
    %516 = vmatprep.subr.bf16.mxu0 0
    %517 = vmatpush1.bf16.msra.mxu0 %v495
    %518 = vmatprep.subr.bf16.mxu0 0
    %519 = vmatpush1.bf16.msra.mxu0 %v496
    %520 = vmatprep.subr.bf16.mxu0 0
    %521 = vmatpush1.bf16.msra.mxu0 %v497
    %522 = vmatprep.subr.bf16.mxu0 0
    %523 = vmatpush1.bf16.msra.mxu0 0
    %524 = vmatprep.subr.bf16.mxu0 0
    %525 = vmatpush1.bf16.msra.mxu0 0
    %526 = vmatprep.subr.bf16.mxu0 0
    %527 = vmatpush1.bf16.msra.mxu0 0
    %528 = vmatprep.subr.bf16.mxu0 0
    %529 = vmatpush1.bf16.msra.mxu0 0
    %530 = vmatprep.subr.bf16.mxu0 0
    %531 = vmatpush1.bf16.msra.mxu0 0
    %532 = vmatprep.subr.bf16.mxu0 0
    %533 = vmatpush1.bf16.msra.mxu0 0
    %534 = vmatprep.subr.bf16.mxu0 0
    %535 = vmatpush1.bf16.msra.mxu0 0
    %536 = vmatprep.subr.bf16.mxu0 0
    %537 = vmatpush1.bf16.msra.mxu0 0
    %538 = vmatprep.mubr.bf16.mxu0 0
    %539 = vmatmul.mubr.bf16.gmra.mrb[0].mxu0 %v419
    %v540 = vpop.f32.mrb[0].mxu0
    %v541 = vadd.f32 %v456, %v540
    %v542 = vpop.f32.mrb[0].mxu0
    %v543 = vpop.f32.mrb[0].mxu0
    %v544 = vadd.f32 %v456, %v543
    %v545 = vpop.f32.mrb[0].mxu0
    %546 = vmatprep.mubr.bf16.mxu0 0
    %547 = vmatmul.mubr.bf16.gmra.mrb[0].mxu0 %v420
    %v548 = vpop.f32.mrb[0].mxu0
    %v549 = vadd.f32 %v456, %v548
    %v550 = vpop.f32.mrb[0].mxu0
    %v551 = vpop.f32.mrb[0].mxu0
    %v552 = vadd.f32 %v456, %v551
    %v553 = vpop.f32.mrb[0].mxu0
    %554 = vmatprep.mubr.bf16.mxu0 0
    %555 = vmatmul.mubr.bf16.gmra.mrb[0].mxu0 %v421
    %v556 = vpop.f32.mrb[0].mxu0
    %v557 = vadd.f32 %v456, %v556
    %v558 = vpop.f32.mrb[0].mxu0
    %v559 = vpop.f32.mrb[0].mxu0
    %v560 = vadd.f32 %v456, %v559
    %v561 = vpop.f32.mrb[0].mxu0
    %562 = vmatprep.mubr.bf16.mxu0 0
    %563 = vmatmul.mubr.bf16.gmra.mrb[0].mxu0 %v422
    %v564 = vpop.f32.mrb[0].mxu0
    %v565 = vadd.f32 %v456, %v564
    %v566 = vpop.f32.mrb[0].mxu0
    %v567 = vpop.f32.mrb[0].mxu0
    %v568 = vadd.f32 %v456, %v567
    %v569 = vpop.f32.mrb[0].mxu0
    %570 = vmatprep.mubr.bf16.mxu0 0
    %571 = vmatmul.mubr.bf16.gmra.mrb[0].mxu0 %v423
    %v572 = vpop.f32.mrb[0].mxu0
    %v573 = vadd.f32 %v456, %v572
    %v574 = vpop.f32.mrb[0].mxu0
    %v575 = vpop.f32.mrb[0].mxu0
    %v576 = vadd.f32 %v456, %v575
    %v577 = vpop.f32.mrb[0].mxu0
    %578 = vmatprep.mubr.bf16.mxu0 0
    %579 = vmatmul.mubr.bf16.gmra.mrb[0].mxu0 %v424
    %v580 = vpop.f32.mrb[0].mxu0
    %v581 = vadd.f32 %v456, %v580
    %v582 = vpop.f32.mrb[0].mxu0
    %v583 = vpop.f32.mrb[0].mxu0
    %v584 = vadd.f32 %v456, %v583
    %v585 = vpop.f32.mrb[0].mxu0
    %586 = vmatprep.mubr.bf16.mxu0 0
    %587 = vmatmul.mubr.bf16.gmra.mrb[0].mxu0 %v425
    %v588 = vpop.f32.mrb[0].mxu0
    %v589 = vadd.f32 %v456, %v588
    %v590 = vpop.f32.mrb[0].mxu0
    %v591 = vpop.f32.mrb[0].mxu0
    %v592 = vadd.f32 %v456, %v591
    %v593 = vpop.f32.mrb[0].mxu0
    %594 = vmatprep.mubr.bf16.mxu0 0
    %595 = vmatmul.mubr.bf16.gmra.mrb[0].mxu0 %v426
    %v596 = vpop.f32.mrb[0].mxu0
    %v597 = vadd.f32 %v456, %v596
    %v598 = vpop.f32.mrb[0].mxu0
    %v599 = vpop.f32.mrb[0].mxu0
    %v600 = vadd.f32 %v456, %v599
    %v601 = vpop.f32.mrb[0].mxu0
    %602 = vmatprep.mubr.bf16.mxu0 0
    %603 = vmatmul.mubr.bf16.gmra.mrb[0].mxu0 %v427
    %v604 = vpop.f32.mrb[0].mxu0
    %v605 = vadd.f32 %v456, %v604
    %v606 = vpop.f32.mrb[0].mxu0
    %v607 = vpop.f32.mrb[0].mxu0
    %v608 = vadd.f32 %v456, %v607
    %v609 = vpop.f32.mrb[0].mxu0
    %610 = vmatprep.mubr.bf16.mxu0 0
    %611 = vmatmul.mubr.bf16.gmra.mrb[0].mxu0 %v428
    %v612 = vpop.f32.mrb[0].mxu0
    %v613 = vadd.f32 %v456, %v612
    %v614 = vpop.f32.mrb[0].mxu0
    %v615 = vpop.f32.mrb[0].mxu0
    %v616 = vadd.f32 %v456, %v615
    %v617 = vpop.f32.mrb[0].mxu0
    %618 = vmatprep.mubr.bf16.mxu0 0
    %619 = vmatmul.mubr.bf16.gmra.mrb[0].mxu0 %v429
    %v620 = vpop.f32.mrb[0].mxu0
    %v621 = vadd.f32 %v456, %v620
    %v622 = vpop.f32.mrb[0].mxu0
    %v623 = vpop.f32.mrb[0].mxu0
    %v624 = vadd.f32 %v456, %v623
    %v625 = vpop.f32.mrb[0].mxu0
    %626 = vmatprep.mubr.bf16.mxu0 0
    %627 = vmatmul.mubr.bf16.gmra.mrb[0].mxu0 %v430
    %v628 = vpop.f32.mrb[0].mxu0
    %v629 = vadd.f32 %v456, %v628
    %v630 = vpop.f32.mrb[0].mxu0
    %v631 = vpop.f32.mrb[0].mxu0
    %v632 = vadd.f32 %v456, %v631
    %v633 = vpop.f32.mrb[0].mxu0
    %634 = vmatprep.mubr.bf16.mxu0 0
    %635 = vmatmul.mubr.bf16.gmra.mrb[0].mxu0 %v431
    %v636 = vpop.f32.mrb[0].mxu0
    %v637 = vadd.f32 %v456, %v636
    %v638 = vpop.f32.mrb[0].mxu0
    %v639 = vpop.f32.mrb[0].mxu0
    %v640 = vadd.f32 %v456, %v639
    %v641 = vpop.f32.mrb[0].mxu0
    %642 = vmatprep.mubr.bf16.mxu0 0
    %643 = vmatmul.mubr.bf16.gmra.mrb[0].mxu0 %v432
    %v644 = vpop.f32.mrb[0].mxu0
    %v645 = vadd.f32 %v456, %v644
    %v646 = vpop.f32.mrb[0].mxu0
    %v647 = vpop.f32.mrb[0].mxu0
    %v648 = vadd.f32 %v456, %v647
    %v649 = vpop.f32.mrb[0].mxu0
    %650 = vmatprep.mubr.bf16.mxu0 0
    %651 = vmatmul.mubr.bf16.gmra.mrb[0].mxu0 %v433
    %v652 = vpop.f32.mrb[0].mxu0
    %v653 = vadd.f32 %v456, %v652
    %v654 = vpop.f32.mrb[0].mxu0
    %v655 = vpop.f32.mrb[0].mxu0
    %v656 = vadd.f32 %v456, %v655
    %v657 = vpop.f32.mrb[0].mxu0
    %658 = vmatprep.mubr.bf16.mxu0 0
    %659 = vmatmul.mubr.bf16.gmra.mrb[0].mxu0 %v434
    %v660 = vpop.f32.mrb[0].mxu0
    %v661 = vadd.f32 %v456, %v660
    %v662 = vpop.f32.mrb[0].mxu0
    %v663 = vpop.f32.mrb[0].mxu0
    %v664 = vadd.f32 %v456, %v663
    %v665 = vpop.f32.mrb[0].mxu0
    %666 = vdwg.mxu0
    %v667 = vmax.f32 %v541, 0.0
    %v668 = vmax.f32 %v544, 0.0
    %v669 = vmax.f32 %v549, 0.0
    %v670 = vmax.f32 %v552, 0.0
    %v671 = vmax.f32 %v557, 0.0
    %v672 = vmax.f32 %v560, 0.0
    %v673 = vmax.f32 %v565, 0.0
    %v674 = vmax.f32 %v568, 0.0
    %v675 = vmax.f32 %v573, 0.0
    %v676 = vmax.f32 %v576, 0.0
    %v677 = vmax.f32 %v581, 0.0
    %v678 = vmax.f32 %v584, 0.0
    %v679 = vmax.f32 %v589, 0.0
    %v680 = vmax.f32 %v592, 0.0
    %v681 = vmax.f32 %v597, 0.0
    %v682 = vmax.f32 %v600, 0.0
    %v683 = vmax.f32 %v605, 0.0
    %v684 = vmax.f32 %v608, 0.0
    %v685 = vmax.f32 %v613, 0.0
    %v686 = vmax.f32 %v616, 0.0
    %v687 = vmax.f32 %v621, 0.0
    %v688 = vmax.f32 %v624, 0.0
    %v689 = vmax.f32 %v629, 0.0
    %v690 = vmax.f32 %v632, 0.0
    %v691 = vmax.f32 %v637, 0.0
    %v692 = vmax.f32 %v640, 0.0
    %v693 = vmax.f32 %v645, 0.0
    %v694 = vmax.f32 %v648, 0.0
    %v695 = vmax.f32 %v653, 0.0
    %v696 = vmax.f32 %v656, 0.0
    %v697 = vmax.f32 %v661, 0.0
    %v698 = vmax.f32 %v664, 0.0
    %v699 = vpack.c.bf16 %v668, %v667
    %v700 = vpack.c.bf16 %v670, %v669
    %v701 = vpack.c.bf16 %v672, %v671
    %v702 = vpack.c.bf16 %v674, %v673
    %v703 = vpack.c.bf16 %v676, %v675
    %v704 = vpack.c.bf16 %v678, %v677
    %v705 = vpack.c.bf16 %v680, %v679
    %v706 = vpack.c.bf16 %v682, %v681
    %v707 = vpack.c.bf16 %v684, %v683
    %v708 = vpack.c.bf16 %v686, %v685
    %v709 = vpack.c.bf16 %v688, %v687
    %v710 = vpack.c.bf16 %v690, %v689
    %v711 = vpack.c.bf16 %v692, %v691
    %v712 = vpack.c.bf16 %v694, %v693
    %v713 = vpack.c.bf16 %v696, %v695
    %v714 = vpack.c.bf16 %v698, %v697
    %v715 = vld [vmem:[%s5] sm:$0xff]
    %v716 = vld [vmem:[%s5 + $0x8] sm:$0xff]
    %v717 = vld [vmem:[%s5 + $0x10] sm:$0xff]
    %v718 = vld [vmem:[%s5 + $0x18] sm:$0xff]
    %v719 = vld [vmem:[%s5 + $0x20] sm:$0xff]
    %v720 = vld [vmem:[%s5 + $0x28] sm:$0xff]
    %v721 = vld [vmem:[%s5 + $0x30] sm:$0xff]
    %v722 = vld [vmem:[%s5 + $0x38] sm:$0xff]
    %v723 = vld [vmem:[%s5 + $0x40] sm:$0xff]
    %v724 = vld [vmem:[%s5 + $0x48] sm:$0xff]
    %v725 = vld [vmem:[%s5 + $0x50] sm:$0xff]
    %v726 = vld [vmem:[%s5 + $0x58] sm:$0xff]
    %v727 = vld [vmem:[%s5 + $0x60] sm:$0xff]
    %v728 = vld [vmem:[%s5 + $0x68] sm:$0xff]
    %v729 = vld [vmem:[%s5 + $0x70] sm:$0xff]
    %v730 = vld [vmem:[%s5 + $0x78] sm:$0xff]
    %v731 = vld [vmem:[%s6] sm:$0x3]
    %v733 = vlaneseq
    %v734 = vshrl.u32 %v733, 7
    %v735 = vsub.s32 0, %v734
    %v736 = vrot.slane %v731, %v735
    %v737 = vlaneseq
    %v738 = vshrl.u32 %v737, 7
    %v739 = vsub.s32 1, %v738
    %v740 = vrot.slane %v731, %v739
    %v759 = vunpack.c.l.b16 %v715
    %v760 = vunpack.c.h.b16 %v715
    %v761 = vunpack.c.l.b16 %v716
    %v762 = vunpack.c.h.b16 %v716
    %v763 = vunpack.c.l.b16 %v717
    %v764 = vunpack.c.h.b16 %v717
    %v765 = vunpack.c.l.b16 %v718
    %v766 = vunpack.c.h.b16 %v718
    %v767 = vunpack.c.l.b16 %v719
    %v768 = vunpack.c.h.b16 %v719
    %v769 = vunpack.c.l.b16 %v720
    %v770 = vunpack.c.h.b16 %v720
    %v771 = vunpack.c.l.b16 %v721
    %v772 = vunpack.c.h.b16 %v721
    %v773 = vunpack.c.l.b16 %v722
    %v774 = vunpack.c.h.b16 %v722
    %v775 = vunpack.c.l.b16 %v723
    %v776 = vunpack.c.h.b16 %v723
    %v777 = vunpack.c.l.b16 %v724
    %v778 = vunpack.c.h.b16 %v724
    %v779 = vunpack.c.l.b16 %v725
    %v780 = vunpack.c.h.b16 %v725
    %v781 = vunpack.c.l.b16 %v726
    %v782 = vunpack.c.h.b16 %v726
    %v783 = vunpack.c.l.b16 %v727
    %v784 = vunpack.c.h.b16 %v727
    %v785 = vunpack.c.l.b16 %v728
    %v786 = vunpack.c.h.b16 %v728
    %v787 = vunpack.c.l.b16 %v729
    %v788 = vunpack.c.h.b16 %v729
    %v789 = vunpack.c.l.b16 %v730
    %v790 = vunpack.c.h.b16 %v730
    %v791 = vpack.c.b16 %v761, %v759
    %v792 = vpack.c.b16 %v762, %v760
    %v793 = vpack.c.b16 %v765, %v763
    %v794 = vpack.c.b16 %v766, %v764
    %v795 = vpack.c.b16 %v769, %v767
    %v796 = vpack.c.b16 %v770, %v768
    %v797 = vpack.c.b16 %v773, %v771
    %v798 = vpack.c.b16 %v774, %v772
    %v799 = vpack.c.b16 %v777, %v775
    %v800 = vpack.c.b16 %v778, %v776
    %v801 = vpack.c.b16 %v781, %v779
    %v802 = vpack.c.b16 %v782, %v780
    %v803 = vpack.c.b16 %v785, %v783
    %v804 = vpack.c.b16 %v786, %v784
    %v805 = vpack.c.b16 %v789, %v787
    %v806 = vpack.c.b16 %v790, %v788
    %823 = vmatprep.subr.bf16.mxu0 %v792
    %824 = vmatpush1.bf16.msra.mxu0 %v791
    %825 = vmatprep.subr.bf16.mxu0 %v794
    %826 = vmatpush1.bf16.msra.mxu0 %v793
    %827 = vmatprep.subr.bf16.mxu0 %v796
    %828 = vmatpush1.bf16.msra.mxu0 %v795
    %829 = vmatprep.subr.bf16.mxu0 %v798
    %830 = vmatpush1.bf16.msra.mxu0 %v797
    %831 = vmatprep.subr.bf16.mxu0 %v800
    %832 = vmatpush1.bf16.msra.mxu0 %v799
    %833 = vmatprep.subr.bf16.mxu0 %v802
    %834 = vmatpush1.bf16.msra.mxu0 %v801
    %835 = vmatprep.subr.bf16.mxu0 %v804
    %836 = vmatpush1.bf16.msra.mxu0 %v803
    %837 = vmatprep.subr.bf16.mxu0 %v806
    %838 = vmatpush1.bf16.msra.mxu0 %v805
    %839 = vmatprep.subr.bf16.mxu0 0
    %840 = vmatpush1.bf16.msra.mxu0 0
    %841 = vmatprep.subr.bf16.mxu0 0
    %842 = vmatpush1.bf16.msra.mxu0 0
    %843 = vmatprep.subr.bf16.mxu0 0
    %844 = vmatpush1.bf16.msra.mxu0 0
    %845 = vmatprep.subr.bf16.mxu0 0
    %846 = vmatpush1.bf16.msra.mxu0 0
    %847 = vmatprep.subr.bf16.mxu0 0
    %848 = vmatpush1.bf16.msra.mxu0 0
    %849 = vmatprep.subr.bf16.mxu0 0
    %850 = vmatpush1.bf16.msra.mxu0 0
    %851 = vmatprep.subr.bf16.mxu0 0
    %852 = vmatpush1.bf16.msra.mxu0 0
    %853 = vmatprep.subr.bf16.mxu0 0
    %854 = vmatpush1.bf16.msra.mxu0 0
    %855 = vmatprep.mubr.bf16.mxu0 0
    %856 = vmatmul.mubr.bf16.gmra.mrb[0].mxu0 %v699
    %v857 = vpop.f32.mrb[0].mxu0
    %v858 = vadd.f32 %v736, %v857
    %v859 = vpop.f32.mrb[0].mxu0
    %v860 = vadd.f32 %v740, %v859
    %v861 = vpop.f32.mrb[0].mxu0
    %v862 = vadd.f32 %v736, %v861
    %v863 = vpop.f32.mrb[0].mxu0
    %v864 = vadd.f32 %v740, %v863
    %865 = vmatprep.mubr.bf16.mxu0 0
    %866 = vmatmul.mubr.bf16.gmra.mrb[0].mxu0 %v700
    %v867 = vpop.f32.mrb[0].mxu0
    %v868 = vadd.f32 %v736, %v867
    %v869 = vpop.f32.mrb[0].mxu0
    %v870 = vadd.f32 %v740, %v869
    %v871 = vpop.f32.mrb[0].mxu0
    %v872 = vadd.f32 %v736, %v871
    %v873 = vpop.f32.mrb[0].mxu0
    %v874 = vadd.f32 %v740, %v873
    %875 = vmatprep.mubr.bf16.mxu0 0
    %876 = vmatmul.mubr.bf16.gmra.mrb[0].mxu0 %v701
    %v877 = vpop.f32.mrb[0].mxu0
    %v878 = vadd.f32 %v736, %v877
    %v879 = vpop.f32.mrb[0].mxu0
    %v880 = vadd.f32 %v740, %v879
    %v881 = vpop.f32.mrb[0].mxu0
    %v882 = vadd.f32 %v736, %v881
    %v883 = vpop.f32.mrb[0].mxu0
    %v884 = vadd.f32 %v740, %v883
    %885 = vmatprep.mubr.bf16.mxu0 0
    %886 = vmatmul.mubr.bf16.gmra.mrb[0].mxu0 %v702
    %v887 = vpop.f32.mrb[0].mxu0
    %v888 = vadd.f32 %v736, %v887
    %v889 = vpop.f32.mrb[0].mxu0
    %v890 = vadd.f32 %v740, %v889
    %v891 = vpop.f32.mrb[0].mxu0
    %v892 = vadd.f32 %v736, %v891
    %v893 = vpop.f32.mrb[0].mxu0
    %v894 = vadd.f32 %v740, %v893
    %895 = vmatprep.mubr.bf16.mxu0 0
    %896 = vmatmul.mubr.bf16.gmra.mrb[0].mxu0 %v703
    %v897 = vpop.f32.mrb[0].mxu0
    %v898 = vadd.f32 %v736, %v897
    %v899 = vpop.f32.mrb[0].mxu0
    %v900 = vadd.f32 %v740, %v899
    %v901 = vpop.f32.mrb[0].mxu0
    %v902 = vadd.f32 %v736, %v901
    %v903 = vpop.f32.mrb[0].mxu0
    %v904 = vadd.f32 %v740, %v903
    %905 = vmatprep.mubr.bf16.mxu0 0
    %906 = vmatmul.mubr.bf16.gmra.mrb[0].mxu0 %v704
    %v907 = vpop.f32.mrb[0].mxu0
    %v908 = vadd.f32 %v736, %v907
    %v909 = vpop.f32.mrb[0].mxu0
    %v910 = vadd.f32 %v740, %v909
    %v911 = vpop.f32.mrb[0].mxu0
    %v912 = vadd.f32 %v736, %v911
    %v913 = vpop.f32.mrb[0].mxu0
    %v914 = vadd.f32 %v740, %v913
    %915 = vmatprep.mubr.bf16.mxu0 0
    %916 = vmatmul.mubr.bf16.gmra.mrb[0].mxu0 %v705
    %v917 = vpop.f32.mrb[0].mxu0
    %v918 = vadd.f32 %v736, %v917
    %v919 = vpop.f32.mrb[0].mxu0
    %v920 = vadd.f32 %v740, %v919
    %v921 = vpop.f32.mrb[0].mxu0
    %v922 = vadd.f32 %v736, %v921
    %v923 = vpop.f32.mrb[0].mxu0
    %v924 = vadd.f32 %v740, %v923
    %925 = vmatprep.mubr.bf16.mxu0 0
    %926 = vmatmul.mubr.bf16.gmra.mrb[0].mxu0 %v706
    %v927 = vpop.f32.mrb[0].mxu0
    %v928 = vadd.f32 %v736, %v927
    %v929 = vpop.f32.mrb[0].mxu0
    %v930 = vadd.f32 %v740, %v929
    %v931 = vpop.f32.mrb[0].mxu0
    %v932 = vadd.f32 %v736, %v931
    %v933 = vpop.f32.mrb[0].mxu0
    %v934 = vadd.f32 %v740, %v933
    %935 = vmatprep.mubr.bf16.mxu0 0
    %936 = vmatmul.mubr.bf16.gmra.mrb[0].mxu0 %v707
    %v937 = vpop.f32.mrb[0].mxu0
    %v938 = vadd.f32 %v736, %v937
    %v939 = vpop.f32.mrb[0].mxu0
    %v940 = vadd.f32 %v740, %v939
    %v941 = vpop.f32.mrb[0].mxu0
    %v942 = vadd.f32 %v736, %v941
    %v943 = vpop.f32.mrb[0].mxu0
    %v944 = vadd.f32 %v740, %v943
    %945 = vmatprep.mubr.bf16.mxu0 0
    %946 = vmatmul.mubr.bf16.gmra.mrb[0].mxu0 %v708
    %v947 = vpop.f32.mrb[0].mxu0
    %v948 = vadd.f32 %v736, %v947
    %v949 = vpop.f32.mrb[0].mxu0
    %v950 = vadd.f32 %v740, %v949
    %v951 = vpop.f32.mrb[0].mxu0
    %v952 = vadd.f32 %v736, %v951
    %v953 = vpop.f32.mrb[0].mxu0
    %v954 = vadd.f32 %v740, %v953
    %955 = vmatprep.mubr.bf16.mxu0 0
    %956 = vmatmul.mubr.bf16.gmra.mrb[0].mxu0 %v709
    %v957 = vpop.f32.mrb[0].mxu0
    %v958 = vadd.f32 %v736, %v957
    %v959 = vpop.f32.mrb[0].mxu0
    %v960 = vadd.f32 %v740, %v959
    %v961 = vpop.f32.mrb[0].mxu0
    %v962 = vadd.f32 %v736, %v961
    %v963 = vpop.f32.mrb[0].mxu0
    %v964 = vadd.f32 %v740, %v963
    %965 = vmatprep.mubr.bf16.mxu0 0
    %966 = vmatmul.mubr.bf16.gmra.mrb[0].mxu0 %v710
    %v967 = vpop.f32.mrb[0].mxu0
    %v968 = vadd.f32 %v736, %v967
    %v969 = vpop.f32.mrb[0].mxu0
    %v970 = vadd.f32 %v740, %v969
    %v971 = vpop.f32.mrb[0].mxu0
    %v972 = vadd.f32 %v736, %v971
    %v973 = vpop.f32.mrb[0].mxu0
    %v974 = vadd.f32 %v740, %v973
    %975 = vmatprep.mubr.bf16.mxu0 0
    %976 = vmatmul.mubr.bf16.gmra.mrb[0].mxu0 %v711
    %v977 = vpop.f32.mrb[0].mxu0
    %v978 = vadd.f32 %v736, %v977
    %v979 = vpop.f32.mrb[0].mxu0
    %v980 = vadd.f32 %v740, %v979
    %v981 = vpop.f32.mrb[0].mxu0
    %v982 = vadd.f32 %v736, %v981
    %v983 = vpop.f32.mrb[0].mxu0
    %v984 = vadd.f32 %v740, %v983
    %985 = vmatprep.mubr.bf16.mxu0 0
    %986 = vmatmul.mubr.bf16.gmra.mrb[0].mxu0 %v712
    %v987 = vpop.f32.mrb[0].mxu0
    %v988 = vadd.f32 %v736, %v987
    %v989 = vpop.f32.mrb[0].mxu0
    %v990 = vadd.f32 %v740, %v989
    %v991 = vpop.f32.mrb[0].mxu0
    %v992 = vadd.f32 %v736, %v991
    %v993 = vpop.f32.mrb[0].mxu0
    %v994 = vadd.f32 %v740, %v993
    %995 = vmatprep.mubr.bf16.mxu0 0
    %996 = vmatmul.mubr.bf16.gmra.mrb[0].mxu0 %v713
    %v997 = vpop.f32.mrb[0].mxu0
    %v998 = vadd.f32 %v736, %v997
    %v999 = vpop.f32.mrb[0].mxu0
    %v1000 = vadd.f32 %v740, %v999
    %v1001 = vpop.f32.mrb[0].mxu0
    %v1002 = vadd.f32 %v736, %v1001
    %v1003 = vpop.f32.mrb[0].mxu0
    %v1004 = vadd.f32 %v740, %v1003
    %1005 = vmatprep.mubr.bf16.mxu0 0
    %1006 = vmatmul.mubr.bf16.gmra.mrb[0].mxu0 %v714
    %v1007 = vpop.f32.mrb[0].mxu0
    %v1008 = vadd.f32 %v736, %v1007
    %v1009 = vpop.f32.mrb[0].mxu0
    %v1010 = vadd.f32 %v740, %v1009
    %v1011 = vpop.f32.mrb[0].mxu0
    %v1012 = vadd.f32 %v736, %v1011
    %v1013 = vpop.f32.mrb[0].mxu0
    %v1014 = vadd.f32 %v740, %v1013
    %1015 = vdwg.mxu0
    %v1016 = vxor.u32 %v858, 2147483648
    %v1017 = vxor.u32 %v860, 2147483648
    %v1018 = vxor.u32 %v862, 2147483648
    %v1019 = vxor.u32 %v864, 2147483648
    %v1020 = vxor.u32 %v868, 2147483648
    %v1021 = vxor.u32 %v870, 2147483648
    %v1022 = vxor.u32 %v872, 2147483648
    %v1023 = vxor.u32 %v874, 2147483648
    %v1024 = vxor.u32 %v878, 2147483648
    %v1025 = vxor.u32 %v880, 2147483648
    %v1026 = vxor.u32 %v882, 2147483648
    %v1027 = vxor.u32 %v884, 2147483648
    %v1028 = vxor.u32 %v888, 2147483648
    %v1029 = vxor.u32 %v890, 2147483648
    %v1030 = vxor.u32 %v892, 2147483648
    %v1031 = vxor.u32 %v894, 2147483648
    %v1032 = vxor.u32 %v898, 2147483648
    %v1033 = vxor.u32 %v900, 2147483648
    %v1034 = vxor.u32 %v902, 2147483648
    %v1035 = vxor.u32 %v904, 2147483648
    %v1036 = vxor.u32 %v908, 2147483648
    %v1037 = vxor.u32 %v910, 2147483648
    %v1038 = vxor.u32 %v912, 2147483648
    %v1039 = vxor.u32 %v914, 2147483648
    %v1040 = vxor.u32 %v918, 2147483648
    %v1041 = vxor.u32 %v920, 2147483648
    %v1042 = vxor.u32 %v922, 2147483648
    %v1043 = vxor.u32 %v924, 2147483648
    %v1044 = vxor.u32 %v928, 2147483648
    %v1045 = vxor.u32 %v930, 2147483648
    %v1046 = vxor.u32 %v932, 2147483648
    %v1047 = vxor.u32 %v934, 2147483648
    %v1048 = vxor.u32 %v938, 2147483648
    %v1049 = vxor.u32 %v940, 2147483648
    %v1050 = vxor.u32 %v942, 2147483648
    %v1051 = vxor.u32 %v944, 2147483648
    %v1052 = vxor.u32 %v948, 2147483648
    %v1053 = vxor.u32 %v950, 2147483648
    %v1054 = vxor.u32 %v952, 2147483648
    %v1055 = vxor.u32 %v954, 2147483648
    %v1056 = vxor.u32 %v958, 2147483648
    %v1057 = vxor.u32 %v960, 2147483648
    %v1058 = vxor.u32 %v962, 2147483648
    %v1059 = vxor.u32 %v964, 2147483648
    %v1060 = vxor.u32 %v968, 2147483648
    %v1061 = vxor.u32 %v970, 2147483648
    %v1062 = vxor.u32 %v972, 2147483648
    %v1063 = vxor.u32 %v974, 2147483648
    %v1064 = vxor.u32 %v978, 2147483648
    %v1065 = vxor.u32 %v980, 2147483648
    %v1066 = vxor.u32 %v982, 2147483648
    %v1067 = vxor.u32 %v984, 2147483648
    %v1068 = vxor.u32 %v988, 2147483648
    %v1069 = vxor.u32 %v990, 2147483648
    %v1070 = vxor.u32 %v992, 2147483648
    %v1071 = vxor.u32 %v994, 2147483648
    %v1072 = vxor.u32 %v998, 2147483648
    %v1073 = vxor.u32 %v1000, 2147483648
    %v1074 = vxor.u32 %v1002, 2147483648
    %v1075 = vxor.u32 %v1004, 2147483648
    %v1076 = vxor.u32 %v1008, 2147483648
    %v1077 = vxor.u32 %v1010, 2147483648
    %v1078 = vxor.u32 %v1012, 2147483648
    %v1079 = vxor.u32 %v1014, 2147483648
    %v1080 = vmul.f32 %v1016, 1.442695
    %v1081 = vpow.pop %v1080
    %v1082 = vmul.f32 %v1017, 1.442695
    %v1083 = vpow.pop %v1082
    %v1084 = vmul.f32 %v1018, 1.442695
    %v1085 = vpow.pop %v1084
    %v1086 = vmul.f32 %v1019, 1.442695
    %v1087 = vpow.pop %v1086
    %v1088 = vmul.f32 %v1020, 1.442695
    %v1089 = vpow.pop %v1088
    %v1090 = vmul.f32 %v1021, 1.442695
    %v1091 = vpow.pop %v1090
    %v1092 = vmul.f32 %v1022, 1.442695
    %v1093 = vpow.pop %v1092
    %v1094 = vmul.f32 %v1023, 1.442695
    %v1095 = vpow.pop %v1094
    %v1096 = vmul.f32 %v1024, 1.442695
    %v1097 = vpow.pop %v1096
    %v1098 = vmul.f32 %v1025, 1.442695
    %v1099 = vpow.pop %v1098
    %v1100 = vmul.f32 %v1026, 1.442695
    %v1101 = vpow.pop %v1100
    %v1102 = vmul.f32 %v1027, 1.442695
    %v1103 = vpow.pop %v1102
    %v1104 = vmul.f32 %v1028, 1.442695
    %v1105 = vpow.pop %v1104
    %v1106 = vmul.f32 %v1029, 1.442695
    %v1107 = vpow.pop %v1106
    %v1108 = vmul.f32 %v1030, 1.442695
    %v1109 = vpow.pop %v1108
    %v1110 = vmul.f32 %v1031, 1.442695
    %v1111 = vpow.pop %v1110
    %v1112 = vmul.f32 %v1032, 1.442695
    %v1113 = vpow.pop %v1112
    %v1114 = vmul.f32 %v1033, 1.442695
    %v1115 = vpow.pop %v1114
    %v1116 = vmul.f32 %v1034, 1.442695
    %v1117 = vpow.pop %v1116
    %v1118 = vmul.f32 %v1035, 1.442695
    %v1119 = vpow.pop %v1118
    %v1120 = vmul.f32 %v1036, 1.442695
    %v1121 = vpow.pop %v1120
    %v1122 = vmul.f32 %v1037, 1.442695
    %v1123 = vpow.pop %v1122
    %v1124 = vmul.f32 %v1038, 1.442695
    %v1125 = vpow.pop %v1124
    %v1126 = vmul.f32 %v1039, 1.442695
    %v1127 = vpow.pop %v1126
    %v1128 = vmul.f32 %v1040, 1.442695
    %v1129 = vpow.pop %v1128
    %v1130 = vmul.f32 %v1041, 1.442695
    %v1131 = vpow.pop %v1130
    %v1132 = vmul.f32 %v1042, 1.442695
    %v1133 = vpow.pop %v1132
    %v1134 = vmul.f32 %v1043, 1.442695
    %v1135 = vpow.pop %v1134
    %v1136 = vmul.f32 %v1044, 1.442695
    %v1137 = vpow.pop %v1136
    %v1138 = vmul.f32 %v1045, 1.442695
    %v1139 = vpow.pop %v1138
    %v1140 = vmul.f32 %v1046, 1.442695
    %v1141 = vpow.pop %v1140
    %v1142 = vmul.f32 %v1047, 1.442695
    %v1143 = vpow.pop %v1142
    %v1144 = vmul.f32 %v1048, 1.442695
    %v1145 = vpow.pop %v1144
    %v1146 = vmul.f32 %v1049, 1.442695
    %v1147 = vpow.pop %v1146
    %v1148 = vmul.f32 %v1050, 1.442695
    %v1149 = vpow.pop %v1148
    %v1150 = vmul.f32 %v1051, 1.442695
    %v1151 = vpow.pop %v1150
    %v1152 = vmul.f32 %v1052, 1.442695
    %v1153 = vpow.pop %v1152
    %v1154 = vmul.f32 %v1053, 1.442695
    %v1155 = vpow.pop %v1154
    %v1156 = vmul.f32 %v1054, 1.442695
    %v1157 = vpow.pop %v1156
    %v1158 = vmul.f32 %v1055, 1.442695
    %v1159 = vpow.pop %v1158
    %v1160 = vmul.f32 %v1056, 1.442695
    %v1161 = vpow.pop %v1160
    %v1162 = vmul.f32 %v1057, 1.442695
    %v1163 = vpow.pop %v1162
    %v1164 = vmul.f32 %v1058, 1.442695
    %v1165 = vpow.pop %v1164
    %v1166 = vmul.f32 %v1059, 1.442695
    %v1167 = vpow.pop %v1166
    %v1168 = vmul.f32 %v1060, 1.442695
    %v1169 = vpow.pop %v1168
    %v1170 = vmul.f32 %v1061, 1.442695
    %v1171 = vpow.pop %v1170
    %v1172 = vmul.f32 %v1062, 1.442695
    %v1173 = vpow.pop %v1172
    %v1174 = vmul.f32 %v1063, 1.442695
    %v1175 = vpow.pop %v1174
    %v1176 = vmul.f32 %v1064, 1.442695
    %v1177 = vpow.pop %v1176
    %v1178 = vmul.f32 %v1065, 1.442695
    %v1179 = vpow.pop %v1178
    %v1180 = vmul.f32 %v1066, 1.442695
    %v1181 = vpow.pop %v1180
    %v1182 = vmul.f32 %v1067, 1.442695
    %v1183 = vpow.pop %v1182
    %v1184 = vmul.f32 %v1068, 1.442695
    %v1185 = vpow.pop %v1184
    %v1186 = vmul.f32 %v1069, 1.442695
    %v1187 = vpow.pop %v1186
    %v1188 = vmul.f32 %v1070, 1.442695
    %v1189 = vpow.pop %v1188
    %v1190 = vmul.f32 %v1071, 1.442695
    %v1191 = vpow.pop %v1190
    %v1192 = vmul.f32 %v1072, 1.442695
    %v1193 = vpow.pop %v1192
    %v1194 = vmul.f32 %v1073, 1.442695
    %v1195 = vpow.pop %v1194
    %v1196 = vmul.f32 %v1074, 1.442695
    %v1197 = vpow.pop %v1196
    %v1198 = vmul.f32 %v1075, 1.442695
    %v1199 = vpow.pop %v1198
    %v1200 = vmul.f32 %v1076, 1.442695
    %v1201 = vpow.pop %v1200
    %v1202 = vmul.f32 %v1077, 1.442695
    %v1203 = vpow.pop %v1202
    %v1204 = vmul.f32 %v1078, 1.442695
    %v1205 = vpow.pop %v1204
    %v1206 = vmul.f32 %v1079, 1.442695
    %v1207 = vpow.pop %v1206
    %v1208 = vadd.f32 %v1081, 1.0
    %v1209 = vadd.f32 %v1083, 1.0
    %v1210 = vadd.f32 %v1085, 1.0
    %v1211 = vadd.f32 %v1087, 1.0
    %v1212 = vadd.f32 %v1089, 1.0
    %v1213 = vadd.f32 %v1091, 1.0
    %v1214 = vadd.f32 %v1093, 1.0
    %v1215 = vadd.f32 %v1095, 1.0
    %v1216 = vadd.f32 %v1097, 1.0
    %v1217 = vadd.f32 %v1099, 1.0
    %v1218 = vadd.f32 %v1101, 1.0
    %v1219 = vadd.f32 %v1103, 1.0
    %v1220 = vadd.f32 %v1105, 1.0
    %v1221 = vadd.f32 %v1107, 1.0
    %v1222 = vadd.f32 %v1109, 1.0
    %v1223 = vadd.f32 %v1111, 1.0
    %v1224 = vadd.f32 %v1113, 1.0
    %v1225 = vadd.f32 %v1115, 1.0
    %v1226 = vadd.f32 %v1117, 1.0
    %v1227 = vadd.f32 %v1119, 1.0
    %v1228 = vadd.f32 %v1121, 1.0
    %v1229 = vadd.f32 %v1123, 1.0
    %v1230 = vadd.f32 %v1125, 1.0
    %v1231 = vadd.f32 %v1127, 1.0
    %v1232 = vadd.f32 %v1129, 1.0
    %v1233 = vadd.f32 %v1131, 1.0
    %v1234 = vadd.f32 %v1133, 1.0
    %v1235 = vadd.f32 %v1135, 1.0
    %v1236 = vadd.f32 %v1137, 1.0
    %v1237 = vadd.f32 %v1139, 1.0
    %v1238 = vadd.f32 %v1141, 1.0
    %v1239 = vadd.f32 %v1143, 1.0
    %v1240 = vadd.f32 %v1145, 1.0
    %v1241 = vadd.f32 %v1147, 1.0
    %v1242 = vadd.f32 %v1149, 1.0
    %v1243 = vadd.f32 %v1151, 1.0
    %v1244 = vadd.f32 %v1153, 1.0
    %v1245 = vadd.f32 %v1155, 1.0
    %v1246 = vadd.f32 %v1157, 1.0
    %v1247 = vadd.f32 %v1159, 1.0
    %v1248 = vadd.f32 %v1161, 1.0
    %v1249 = vadd.f32 %v1163, 1.0
    %v1250 = vadd.f32 %v1165, 1.0
    %v1251 = vadd.f32 %v1167, 1.0
    %v1252 = vadd.f32 %v1169, 1.0
    %v1253 = vadd.f32 %v1171, 1.0
    %v1254 = vadd.f32 %v1173, 1.0
    %v1255 = vadd.f32 %v1175, 1.0
    %v1256 = vadd.f32 %v1177, 1.0
    %v1257 = vadd.f32 %v1179, 1.0
    %v1258 = vadd.f32 %v1181, 1.0
    %v1259 = vadd.f32 %v1183, 1.0
    %v1260 = vadd.f32 %v1185, 1.0
    %v1261 = vadd.f32 %v1187, 1.0
    %v1262 = vadd.f32 %v1189, 1.0
    %v1263 = vadd.f32 %v1191, 1.0
    %v1264 = vadd.f32 %v1193, 1.0
    %v1265 = vadd.f32 %v1195, 1.0
    %v1266 = vadd.f32 %v1197, 1.0
    %v1267 = vadd.f32 %v1199, 1.0
    %v1268 = vadd.f32 %v1201, 1.0
    %v1269 = vadd.f32 %v1203, 1.0
    %v1270 = vadd.f32 %v1205, 1.0
    %v1271 = vadd.f32 %v1207, 1.0
    %v1272 = vrcp.pop %v1208
    %v1273 = vmul.f32 1.0, %v1272
    %v1274 = vrcp.pop %v1209
    %v1275 = vmul.f32 1.0, %v1274
    %v1276 = vrcp.pop %v1210
    %v1277 = vmul.f32 1.0, %v1276
    %v1278 = vrcp.pop %v1211
    %v1279 = vmul.f32 1.0, %v1278
    %v1280 = vrcp.pop %v1212
    %v1281 = vmul.f32 1.0, %v1280
    %v1282 = vrcp.pop %v1213
    %v1283 = vmul.f32 1.0, %v1282
    %v1284 = vrcp.pop %v1214
    %v1285 = vmul.f32 1.0, %v1284
    %v1286 = vrcp.pop %v1215
    %v1287 = vmul.f32 1.0, %v1286
    %v1288 = vrcp.pop %v1216
    %v1289 = vmul.f32 1.0, %v1288
    %v1290 = vrcp.pop %v1217
    %v1291 = vmul.f32 1.0, %v1290
    %v1292 = vrcp.pop %v1218
    %v1293 = vmul.f32 1.0, %v1292
    %v1294 = vrcp.pop %v1219
    %v1295 = vmul.f32 1.0, %v1294
    %v1296 = vrcp.pop %v1220
    %v1297 = vmul.f32 1.0, %v1296
    %v1298 = vrcp.pop %v1221
    %v1299 = vmul.f32 1.0, %v1298
    %v1300 = vrcp.pop %v1222
    %v1301 = vmul.f32 1.0, %v1300
    %v1302 = vrcp.pop %v1223
    %v1303 = vmul.f32 1.0, %v1302
    %v1304 = vrcp.pop %v1224
    %v1305 = vmul.f32 1.0, %v1304
    %v1306 = vrcp.pop %v1225
    %v1307 = vmul.f32 1.0, %v1306
    %v1308 = vrcp.pop %v1226
    %v1309 = vmul.f32 1.0, %v1308
    %v1310 = vrcp.pop %v1227
    %v1311 = vmul.f32 1.0, %v1310
    %v1312 = vrcp.pop %v1228
    %v1313 = vmul.f32 1.0, %v1312
    %v1314 = vrcp.pop %v1229
    %v1315 = vmul.f32 1.0, %v1314
    %v1316 = vrcp.pop %v1230
    %v1317 = vmul.f32 1.0, %v1316
    %v1318 = vrcp.pop %v1231
    %v1319 = vmul.f32 1.0, %v1318
    %v1320 = vrcp.pop %v1232
    %v1321 = vmul.f32 1.0, %v1320
    %v1322 = vrcp.pop %v1233
    %v1323 = vmul.f32 1.0, %v1322
    %v1324 = vrcp.pop %v1234
    %v1325 = vmul.f32 1.0, %v1324
    %v1326 = vrcp.pop %v1235
    %v1327 = vmul.f32 1.0, %v1326
    %v1328 = vrcp.pop %v1236
    %v1329 = vmul.f32 1.0, %v1328
    %v1330 = vrcp.pop %v1237
    %v1331 = vmul.f32 1.0, %v1330
    %v1332 = vrcp.pop %v1238
    %v1333 = vmul.f32 1.0, %v1332
    %v1334 = vrcp.pop %v1239
    %v1335 = vmul.f32 1.0, %v1334
    %v1336 = vrcp.pop %v1240
    %v1337 = vmul.f32 1.0, %v1336
    %v1338 = vrcp.pop %v1241
    %v1339 = vmul.f32 1.0, %v1338
    %v1340 = vrcp.pop %v1242
    %v1341 = vmul.f32 1.0, %v1340
    %v1342 = vrcp.pop %v1243
    %v1343 = vmul.f32 1.0, %v1342
    %v1344 = vrcp.pop %v1244
    %v1345 = vmul.f32 1.0, %v1344
    %v1346 = vrcp.pop %v1245
    %v1347 = vmul.f32 1.0, %v1346
    %v1348 = vrcp.pop %v1246
    %v1349 = vmul.f32 1.0, %v1348
    %v1350 = vrcp.pop %v1247
    %v1351 = vmul.f32 1.0, %v1350
    %v1352 = vrcp.pop %v1248
    %v1353 = vmul.f32 1.0, %v1352
    %v1354 = vrcp.pop %v1249
    %v1355 = vmul.f32 1.0, %v1354
    %v1356 = vrcp.pop %v1250
    %v1357 = vmul.f32 1.0, %v1356
    %v1358 = vrcp.pop %v1251
    %v1359 = vmul.f32 1.0, %v1358
    %v1360 = vrcp.pop %v1252
    %v1361 = vmul.f32 1.0, %v1360
    %v1362 = vrcp.pop %v1253
    %v1363 = vmul.f32 1.0, %v1362
    %v1364 = vrcp.pop %v1254
    %v1365 = vmul.f32 1.0, %v1364
    %v1366 = vrcp.pop %v1255
    %v1367 = vmul.f32 1.0, %v1366
    %v1368 = vrcp.pop %v1256
    %v1369 = vmul.f32 1.0, %v1368
    %v1370 = vrcp.pop %v1257
    %v1371 = vmul.f32 1.0, %v1370
    %v1372 = vrcp.pop %v1258
    %v1373 = vmul.f32 1.0, %v1372
    %v1374 = vrcp.pop %v1259
    %v1375 = vmul.f32 1.0, %v1374
    %v1376 = vrcp.pop %v1260
    %v1377 = vmul.f32 1.0, %v1376
    %v1378 = vrcp.pop %v1261
    %v1379 = vmul.f32 1.0, %v1378
    %v1380 = vrcp.pop %v1262
    %v1381 = vmul.f32 1.0, %v1380
    %v1382 = vrcp.pop %v1263
    %v1383 = vmul.f32 1.0, %v1382
    %v1384 = vrcp.pop %v1264
    %v1385 = vmul.f32 1.0, %v1384
    %v1386 = vrcp.pop %v1265
    %v1387 = vmul.f32 1.0, %v1386
    %v1388 = vrcp.pop %v1266
    %v1389 = vmul.f32 1.0, %v1388
    %v1390 = vrcp.pop %v1267
    %v1391 = vmul.f32 1.0, %v1390
    %v1392 = vrcp.pop %v1268
    %v1393 = vmul.f32 1.0, %v1392
    %v1394 = vrcp.pop %v1269
    %v1395 = vmul.f32 1.0, %v1394
    %v1396 = vrcp.pop %v1270
    %v1397 = vmul.f32 1.0, %v1396
    %v1398 = vrcp.pop %v1271
    %v1399 = vmul.f32 1.0, %v1398
    %1400 = vst [vmem:[#allocation5] sm:$0xff] %v1273
    %1401 = vst [vmem:[#allocation5 + $0x8] sm:$0xff] %v1275
    %1402 = vst [vmem:[#allocation5 + $0x10] sm:$0xff] %v1277
    %1403 = vst [vmem:[#allocation5 + $0x18] sm:$0xff] %v1279
    %1404 = vst [vmem:[#allocation5 + $0x20] sm:$0xff] %v1281
    %1405 = vst [vmem:[#allocation5 + $0x28] sm:$0xff] %v1283
    %1406 = vst [vmem:[#allocation5 + $0x30] sm:$0xff] %v1285
    %1407 = vst [vmem:[#allocation5 + $0x38] sm:$0xff] %v1287
    %1408 = vst [vmem:[#allocation5 + $0x40] sm:$0xff] %v1289
    %1409 = vst [vmem:[#allocation5 + $0x48] sm:$0xff] %v1291
    %1410 = vst [vmem:[#allocation5 + $0x50] sm:$0xff] %v1293
    %1411 = vst [vmem:[#allocation5 + $0x58] sm:$0xff] %v1295
    %1412 = vst [vmem:[#allocation5 + $0x60] sm:$0xff] %v1297
    %1413 = vst [vmem:[#allocation5 + $0x68] sm:$0xff] %v1299
    %1414 = vst [vmem:[#allocation5 + $0x70] sm:$0xff] %v1301
    %1415 = vst [vmem:[#allocation5 + $0x78] sm:$0xff] %v1303
    %1416 = vst [vmem:[#allocation5 + $0x80] sm:$0xff] %v1305
    %1417 = vst [vmem:[#allocation5 + $0x88] sm:$0xff] %v1307
    %1418 = vst [vmem:[#allocation5 + $0x90] sm:$0xff] %v1309
    %1419 = vst [vmem:[#allocation5 + $0x98] sm:$0xff] %v1311
    %1420 = vst [vmem:[#allocation5 + $0xa0] sm:$0xff] %v1313
    %1421 = vst [vmem:[#allocation5 + $0xa8] sm:$0xff] %v1315
    %1422 = vst [vmem:[#allocation5 + $0xb0] sm:$0xff] %v1317
    %1423 = vst [vmem:[#allocation5 + $0xb8] sm:$0xff] %v1319
    %1424 = vst [vmem:[#allocation5 + $0xc0] sm:$0xff] %v1321
    %1425 = vst [vmem:[#allocation5 + $0xc8] sm:$0xff] %v1323
    %1426 = vst [vmem:[#allocation5 + $0xd0] sm:$0xff] %v1325
    %1427 = vst [vmem:[#allocation5 + $0xd8] sm:$0xff] %v1327
    %1428 = vst [vmem:[#allocation5 + $0xe0] sm:$0xff] %v1329
    %1429 = vst [vmem:[#allocation5 + $0xe8] sm:$0xff] %v1331
    %1430 = vst [vmem:[#allocation5 + $0xf0] sm:$0xff] %v1333
    %1431 = vst [vmem:[#allocation5 + $0xf8] sm:$0xff] %v1335
    %1432 = vst [vmem:[#allocation5 + $0x100] sm:$0xff] %v1337
    %1433 = vst [vmem:[#allocation5 + $0x108] sm:$0xff] %v1339
    %1434 = vst [vmem:[#allocation5 + $0x110] sm:$0xff] %v1341
    %1435 = vst [vmem:[#allocation5 + $0x118] sm:$0xff] %v1343
    %1436 = vst [vmem:[#allocation5 + $0x120] sm:$0xff] %v1345
    %1437 = vst [vmem:[#allocation5 + $0x128] sm:$0xff] %v1347
    %1438 = vst [vmem:[#allocation5 + $0x130] sm:$0xff] %v1349
    %1439 = vst [vmem:[#allocation5 + $0x138] sm:$0xff] %v1351
    %1440 = vst [vmem:[#allocation5 + $0x140] sm:$0xff] %v1353
    %1441 = vst [vmem:[#allocation5 + $0x148] sm:$0xff] %v1355
    %1442 = vst [vmem:[#allocation5 + $0x150] sm:$0xff] %v1357
    %1443 = vst [vmem:[#allocation5 + $0x158] sm:$0xff] %v1359
    %1444 = vst [vmem:[#allocation5 + $0x160] sm:$0xff] %v1361
    %1445 = vst [vmem:[#allocation5 + $0x168] sm:$0xff] %v1363
    %1446 = vst [vmem:[#allocation5 + $0x170] sm:$0xff] %v1365
    %1447 = vst [vmem:[#allocation5 + $0x178] sm:$0xff] %v1367
    %1448 = vst [vmem:[#allocation5 + $0x180] sm:$0xff] %v1369
    %1449 = vst [vmem:[#allocation5 + $0x188] sm:$0xff] %v1371
    %1450 = vst [vmem:[#allocation5 + $0x190] sm:$0xff] %v1373
    %1451 = vst [vmem:[#allocation5 + $0x198] sm:$0xff] %v1375
    %1452 = vst [vmem:[#allocation5 + $0x1a0] sm:$0xff] %v1377
    %1453 = vst [vmem:[#allocation5 + $0x1a8] sm:$0xff] %v1379
    %1454 = vst [vmem:[#allocation5 + $0x1b0] sm:$0xff] %v1381
    %1455 = vst [vmem:[#allocation5 + $0x1b8] sm:$0xff] %v1383
    %1456 = vst [vmem:[#allocation5 + $0x1c0] sm:$0xff] %v1385
    %1457 = vst [vmem:[#allocation5 + $0x1c8] sm:$0xff] %v1387
    %1458 = vst [vmem:[#allocation5 + $0x1d0] sm:$0xff] %v1389
    %1459 = vst [vmem:[#allocation5 + $0x1d8] sm:$0xff] %v1391
    %1460 = vst [vmem:[#allocation5 + $0x1e0] sm:$0xff] %v1393
    %1461 = vst [vmem:[#allocation5 + $0x1e8] sm:$0xff] %v1395
    %1462 = vst [vmem:[#allocation5 + $0x1f0] sm:$0xff] %v1397
    %1463 = vst [vmem:[#allocation5 + $0x1f8] sm:$0xff] %v1399
    // Predicated region
    $region34: #{tpu_custom_call.1} parent=1 // pred_check
      _
    $region35: #{tpu_custom_call.1} parent=1 // pred_check_branch
      %1465 = sbr.rel (0) target = $region37
    $region36: #{tpu_custom_call.1} parent=1 // pred_region
      %s1467 = ssub.s32 8192, 8192
      %1468 = vsyncadd [#allocation4], %s1467
      %s1469 = sshll.u32 [#allocation5], 4
      %s1470 = int_to_ptr.vmem [resolvable:$true] %s1469
      %1475 = dma.vmem_to_hbm [thread:$0]  %s1470, 8192, %s7, [#allocation4], 256, 256, 16
    $region37: #{tpu_custom_call.1} parent=1 // pred_fallthru
      _
    // Predicated region
    $region38: #{tpu_custom_call.1} parent=1 // pred_check
      _
    $region39: #{tpu_custom_call.1} parent=1 // pred_check_branch
      %1477 = sbr.rel (0) target = $region41
    $region40: #{tpu_custom_call.1} parent=1 // pred_region
      %1478 = dma.done [#allocation4], 8192
    $region41: #{tpu_custom_call.1} parent=1 // pred_fallthru
      _
    %1479 = vsyncpa [#allocation3], 1
    %1480 = vsyncpa [#allocation4], 1

</llo_original>
